<compile_context>
chip_gen: v7x
topology: tpu7x:2x2x1
jax: 0.10.0
libtpu: 0.0.40
codegen_flags: <defaults>
</compile_context>

<pallas_src>
import jax
import jax.numpy as jnp
from jax.experimental import pallas as pl
from jax.experimental.pallas import tpu as pltpu


def _gru_fc_kernel(x_ref, w_ih_t_ref, gi_bias_ref,
                   w_hr_t_ref, w_hz_t_ref, w_hn_t_ref, b_hn_ref,
                   w_fc_t_ref, b_fc_ref,
                   latent_ref, hidden_ref,
                   h_scratch, gi_r_s, gi_z_s, gi_n_s):
    B, H = h_scratch.shape
    TB = x_ref.shape[0]          # T_chunk * B
    TC = TB // B                 # timesteps in this chunk (static)

    @pl.when(pl.program_id(0) == 0)
    def _():
        # nn.GRU called without h0 -> zero initial hidden state.
        h_scratch[...] = jnp.zeros_like(h_scratch)

    # ---- Phase 1: hoisted input projection for the whole chunk (bf16 MXU). ----
    gi = jnp.dot(x_ref[...], w_ih_t_ref[...],
                 preferred_element_type=jnp.float32) + gi_bias_ref[...]
    # Stage per-gate slabs in VMEM so the serial loop below does plain aligned
    # static-offset loads instead of slicing a large live value each step.
    gi_r_s[...] = gi[:, 0:H]
    gi_z_s[...] = gi[:, H:2 * H]
    gi_n_s[...] = gi[:, 2 * H:3 * H]

    # Recurrent operands loaded once per chunk (f32).
    w_hr = w_hr_t_ref[...]
    w_hz = w_hz_t_ref[...]
    w_hn = w_hn_t_ref[...]
    b_hn = b_hn_ref[...]

    # ---- Phase 2: serial GRU recurrence, fully unrolled; h kept live in vregs. ----
    h = h_scratch[...]                      # (B, H) f32
    for t in range(TC):                     # static trip count -> static offsets
        lo = t * B
        gh_r = jnp.dot(h, w_hr, preferred_element_type=jnp.float32)
        gh_z = jnp.dot(h, w_hz, preferred_element_type=jnp.float32)
        gh_n = jnp.dot(h, w_hn, preferred_element_type=jnp.float32)
        r = jax.nn.sigmoid(gi_r_s[lo:lo + B, :] + gh_r)   # b_ir + b_hr folded in gi
        z = jax.nn.sigmoid(gi_z_s[lo:lo + B, :] + gh_z)   # b_iz + b_hz folded in gi
        n = jnp.tanh(gi_n_s[lo:lo + B, :] + r * (gh_n + b_hn))
        h = (1.0 - z) * n + z * h
        hidden_ref[lo:lo + B, :] = h        # store into the VMEM-resident chunk block
    h_scratch[...] = h                      # carry h to the next chunk

    # ---- Phase 3: hoisted fc head over the whole chunk (bf16 MXU), one store. ----
    hs = hidden_ref[...]                    # (TC*B, H) f32, just written above
    latent_ref[...] = (jnp.dot(hs.astype(jnp.bfloat16), w_fc_t_ref[...],
                               preferred_element_type=jnp.float32)
                       + b_fc_ref[...])


def _pick_chunk(T, max_chunk=32):
    """Largest divisor of T that is <= max_chunk (timesteps per grid step)."""
    tc = min(T, max_chunk)
    while T % tc != 0:
        tc -= 1
    return tc


@jax.jit
def gating_encoder_forward(x, w_ih, w_hh, b_ih, b_hh, w_fc, b_fc):
    """x: (T, B, input_dim) float32. Returns (latent (T,B,O), hidden (T,B,H))."""
    T, B, D = x.shape
    H = w_hh.shape[1]
    O = w_fc.shape[0]
    TC = _pick_chunk(T)
    grid = (T // TC,)

    f32, bf16 = jnp.float32, jnp.bfloat16

    # Hoisted-matmul operands in bf16 (accumulation stays f32 inside the kernel).
    x2 = x.astype(f32).reshape(T * B, D).astype(bf16)
    w_ih_t = jnp.asarray(w_ih, f32).T.astype(bf16)                  # (D, 3H)
    w_fc_t = jnp.asarray(w_fc, f32).T.astype(bf16)                  # (H, O)

    # Recurrent operands stay f32; W_hh split per gate so each gate's gh lands
    # in its own vreg; fold b_ih+b_hh for r/z, keep b_hh_n separate (n-gate).
    w_hh_f = jnp.asarray(w_hh, f32)
    w_hr_t = w_hh_f[0:H, :].T                                       # (H, H)
    w_hz_t = w_hh_f[H:2 * H, :].T
    w_hn_t = w_hh_f[2 * H:3 * H, :].T
    b_ih_f = jnp.asarray(b_ih, f32)
    b_hh_f = jnp.asarray(b_hh, f32)
    gi_bias = jnp.concatenate(
        [b_ih_f[:2 * H] + b_hh_f[:2 * H], b_ih_f[2 * H:]]).reshape(1, 3 * H)
    b_hn = b_hh_f[2 * H:3 * H].reshape(1, H)
    b_fc2 = jnp.asarray(b_fc, f32).reshape(1, O)

    const = lambda shape: pl.BlockSpec(shape, lambda c: (0,) * len(shape))

    latent2, hidden2 = pl.pallas_call(
        _gru_fc_kernel,
        out_shape=(
            jax.ShapeDtypeStruct((T * B, O), f32),
            jax.ShapeDtypeStruct((T * B, H), f32),
        ),
        grid_spec=pltpu.PrefetchScalarGridSpec(
            num_scalar_prefetch=0,
            grid=grid,
            in_specs=[
                pl.BlockSpec((TC * B, D), lambda c: (c, 0)),   # x, one T-chunk per step
                const((D, 3 * H)),                             # W_ih^T        (bf16)
                const((1, 3 * H)),                             # folded gi bias (f32)
                const((H, H)),                                 # W_hr^T        (f32)
                const((H, H)),                                 # W_hz^T        (f32)
                const((H, H)),                                 # W_hn^T        (f32)
                const((1, H)),                                 # b_hh_n        (f32)
                const((H, O)),                                 # W_fc^T        (bf16)
                const((1, O)),                                 # b_fc          (f32)
            ],
            out_specs=[
                pl.BlockSpec((TC * B, O), lambda c: (c, 0)),   # latent chunk
                pl.BlockSpec((TC * B, H), lambda c: (c, 0)),   # hidden chunk
            ],
            scratch_shapes=[
                pltpu.VMEM((B, H), f32),          # recurrent h carry across chunks
                pltpu.VMEM((TC * B, H), f32),     # gi_r staging for the chunk
                pltpu.VMEM((TC * B, H), f32),     # gi_z staging
                pltpu.VMEM((TC * B, H), f32),     # gi_n staging
            ],
        ),
        compiler_params=pltpu.CompilerParams(
            dimension_semantics=("arbitrary",),   # recurrence is serial across chunks
        ),
    )(x2, w_ih_t, gi_bias, w_hr_t, w_hz_t, w_hn_t, b_hn, w_fc_t, b_fc2)

    return latent2.reshape(T, B, O), hidden2.reshape(T, B, H)


# ---------------- deterministic parameter init (matches module __init__) ----
def orthogonal_init(key, shape):
    """Rows/cols-orthonormal matrix like nn.init.orthogonal_."""
    rows, cols = shape
    flat = jax.random.normal(key, (max(rows, cols), min(rows, cols)), jnp.float32)
    q, r = jnp.linalg.qr(flat)
    q = q * jnp.sign(jnp.diag(r))[None, :]
    if rows < cols:
        q = q.T
    return q[:rows, :cols]


def pure_jax_reference(x, w_ih, w_hh, b_ih, b_hh, w_fc, b_fc):
    """Reference GRU+fc. Mirrors the kernel's precision policy: bf16 operands /
    f32 accumulation for the hoisted gi and fc matmuls, f32 recurrent math."""
    T, B, D = x.shape
    H = w_hh.shape[1]
    gi_all = (jnp.dot(x.reshape(T * B, D).astype(jnp.bfloat16),
                      w_ih.T.astype(jnp.bfloat16),
                      preferred_element_type=jnp.float32)
              .reshape(T, B, 3 * H) + b_ih)

    def step(h, gi_t):
        gh = jnp.dot(h, w_hh.T, precision=jax.lax.Precision.HIGHEST,
                     preferred_element_type=jnp.float32) + b_hh
        i_r, i_z, i_n = jnp.split(gi_t, 3, axis=-1)
        h_r, h_z, h_n = jnp.split(gh, 3, axis=-1)
        r = jax.nn.sigmoid(i_r + h_r)
        z = jax.nn.sigmoid(i_z + h_z)
        n = jnp.tanh(i_n + r * h_n)
        h_new = (1.0 - z) * n + z * h
        return h_new, h_new

    h0 = jnp.zeros((B, H), jnp.float32)
    _, hs = jax.lax.scan(step, h0, gi_all)
    latent = (jnp.dot(hs.reshape(T * B, H).astype(jnp.bfloat16),
                      w_fc.T.astype(jnp.bfloat16),
                      preferred_element_type=jnp.float32)
              .reshape(T, B, -1) + b_fc)
    return latent, hs


if __name__ == "__main__":
    # Small shapes consistent with the module's forward (take_action=True, take_state=True)
    T, B = 8, 2
    action_dim, state_dim = 4, 4
    hidden_size, output_dim = 32, 8
    # concat: action + state + left_err + right_err + left_gate + right_gate + prev_hidden
    input_dim = action_dim + state_dim + 1 + 1 + 1 + 1 + hidden_size  # = 44

    key = jax.random.PRNGKey(0)
    keys = jax.random.split(key, 12)

    action = jax.random.normal(keys[0], (T, B, action_dim), jnp.float32)
    state = jax.random.normal(keys[1], (T, B, state_dim), jnp.float32)
    left_reward_err = jax.random.normal(keys[2], (T, B, 1), jnp.float32)
    right_reward_err = jax.random.normal(keys[3], (T, B, 1), jnp.float32)
    left_gate_value = jax.random.normal(keys[4], (T, B, 1), jnp.float32)
    right_gate_value = jax.random.normal(keys[5], (T, B, 1), jnp.float32)
    hidden_state_in = jax.random.normal(keys[6], (T, B, hidden_size), jnp.float32)

    # GRU params: weights orthogonal, biases zero (as in __init__)
    w_ih = orthogonal_init(keys[7], (3 * hidden_size, input_dim))
    w_hh = orthogonal_init(keys[8], (3 * hidden_size, hidden_size))
    b_ih = jnp.zeros((3 * hidden_size,), jnp.float32)
    b_hh = jnp.zeros((3 * hidden_size,), jnp.float32)
    # fc params (deterministic uniform, stand-in for PyTorch default init)
    bound = 1.0 / jnp.sqrt(hidden_size)
    w_fc = jax.random.uniform(keys[9], (output_dim, hidden_size), jnp.float32, -bound, bound)
    b_fc = jax.random.uniform(keys[10], (output_dim,), jnp.float32, -bound, bound)

    # concat (glue, plain JAX) -- take_action and take_state branch
    x = jnp.concatenate(
        (action, state, left_reward_err, right_reward_err,
         left_gate_value, right_gate_value, hidden_state_in), axis=-1)

    latent, hidden = gating_encoder_forward(x, w_ih, w_hh, b_ih, b_hh, w_fc, b_fc)
    jax.block_until_ready((latent, hidden))

    latent_want, hidden_want = pure_jax_reference(x, w_ih, w_hh, b_ih, b_hh, w_fc, b_fc)
    assert latent.shape == (T, B, output_dim) and hidden.shape == (T, B, hidden_size)
    # Tolerance accounts for bf16 MXU operands on the hoisted matmuls; real bugs
    # (gate order / bias handling / transpose errors) produce O(0.1-1) deviations.
    assert jnp.allclose(hidden, hidden_want, atol=2e-2, rtol=2e-2)
    assert jnp.allclose(latent, latent_want, atol=2e-2, rtol=2e-2)

    print("KERNEL_OK")
</pallas_src>

<mosaic_0001>
module attributes {stable_mosaic.version = 11 : i64} {
  func.func @_gru_fc_kernel(%arg0: i32, %arg1: memref<16x44xbf16, #tpu.memory_space<vmem>>, %arg2: memref<44x96xbf16, #tpu.memory_space<vmem>>, %arg3: memref<1x96xf32, #tpu.memory_space<vmem>>, %arg4: memref<32x32xf32, #tpu.memory_space<vmem>>, %arg5: memref<32x32xf32, #tpu.memory_space<vmem>>, %arg6: memref<32x32xf32, #tpu.memory_space<vmem>>, %arg7: memref<1x32xf32, #tpu.memory_space<vmem>>, %arg8: memref<32x8xbf16, #tpu.memory_space<vmem>>, %arg9: memref<1x8xf32, #tpu.memory_space<vmem>>, %arg10: memref<16x8xf32, #tpu.memory_space<vmem>>, %arg11: memref<16x32xf32, #tpu.memory_space<vmem>>, %arg12: memref<2x32xf32, #tpu.memory_space<vmem>>, %arg13: memref<16x32xf32, #tpu.memory_space<vmem>>, %arg14: memref<16x32xf32, #tpu.memory_space<vmem>>, %arg15: memref<16x32xf32, #tpu.memory_space<vmem>>) attributes {dimension_semantics = [#tpu.dimension_semantics<arbitrary>], iteration_bounds = array<i64: 1>, scalar_prefetch = 0 : i64, scratch_operands = 4 : i64, tpu.core_type = #tpu.core_type<tc>, window_params = [{transform_indices = @transform_0, window_bounds = array<i64: 16, 44>}, {pipeline_mode = #tpu.pipeline_mode<synchronous>, transform_indices = @transform_1, window_bounds = array<i64: 44, 96>}, {pipeline_mode = #tpu.pipeline_mode<synchronous>, transform_indices = @transform_2, window_bounds = array<i64: 1, 96>}, {pipeline_mode = #tpu.pipeline_mode<synchronous>, transform_indices = @transform_3, window_bounds = array<i64: 32, 32>}, {pipeline_mode = #tpu.pipeline_mode<synchronous>, transform_indices = @transform_4, window_bounds = array<i64: 32, 32>}, {pipeline_mode = #tpu.pipeline_mode<synchronous>, transform_indices = @transform_5, window_bounds = array<i64: 32, 32>}, {pipeline_mode = #tpu.pipeline_mode<synchronous>, transform_indices = @transform_6, window_bounds = array<i64: 1, 32>}, {pipeline_mode = #tpu.pipeline_mode<synchronous>, transform_indices = @transform_7, window_bounds = array<i64: 32, 8>}, {pipeline_mode = #tpu.pipeline_mode<synchronous>, transform_indices = @transform_8, window_bounds = array<i64: 1, 8>}, {transform_indices = @transform_9, window_bounds = array<i64: 16, 8>}, {transform_indices = @transform_10, window_bounds = array<i64: 16, 32>}]} {
    %c0_i32 = arith.constant 0 : i32
    %0 = arith.cmpi eq, %arg0, %c0_i32 : i32
    %1 = arith.extui %0 : i1 to i32
    %c0_i32_0 = arith.constant 0 : i32
    %2 = arith.cmpi ne, %1, %c0_i32_0 : i32
    scf.if %2 {
      %cst_138 = arith.constant 0.000000e+00 : f32
      %261 = vector.broadcast %cst_138 : f32 to vector<2x32xf32>
      %c0_139 = arith.constant 0 : index
      %c0_140 = arith.constant 0 : index
      %262 = vector.load %arg12[%c0_139, %c0_140] : memref<2x32xf32, #tpu.memory_space<vmem>>, vector<2x32xf32>
      tpu.vector_store %arg12[%c0_139, %c0_140], %261 {strides = array<i32>} : memref<2x32xf32, #tpu.memory_space<vmem>>, vector<2x32xf32>,
    } else {
    }
    %c0 = arith.constant 0 : index
    %c0_1 = arith.constant 0 : index
    %3 = vector.load %arg1[%c0, %c0_1] : memref<16x44xbf16, #tpu.memory_space<vmem>>, vector<16x44xbf16>
    %c0_2 = arith.constant 0 : index
    %c0_3 = arith.constant 0 : index
    %4 = vector.load %arg2[%c0_2, %c0_3] : memref<44x96xbf16, #tpu.memory_space<vmem>>, vector<44x96xbf16>
    %cst = arith.constant dense<0.000000e+00> : vector<16x96xf32>
    %5 = tpu.matmul %3, %4, %cst {dimension_numbers = #tpu.dot_dimension_numbers<[1], [0], [0], [1], [0, 0, 1, 1], [], []>} : vector<16x44xbf16>, vector<44x96xbf16>, vector<16x96xf32> -> vector<16x96xf32>
    %c0_4 = arith.constant 0 : index
    %c0_5 = arith.constant 0 : index
    %6 = vector.load %arg3[%c0_4, %c0_5] : memref<1x96xf32, #tpu.memory_space<vmem>>, vector<1x96xf32>
    %7 = vector.broadcast %6 : vector<1x96xf32> to vector<16x96xf32>
    %8 = arith.addf %5, %7 : vector<16x96xf32>
    %9 = vector.extract_strided_slice %8 {offsets = [0, 0], sizes = [16, 32], strides = [1, 1]} : vector<16x96xf32> to vector<16x32xf32>
    %c0_6 = arith.constant 0 : index
    %c0_7 = arith.constant 0 : index
    %10 = vector.load %arg13[%c0_6, %c0_7] : memref<16x32xf32, #tpu.memory_space<vmem>>, vector<16x32xf32>
    tpu.vector_store %arg13[%c0_6, %c0_7], %9 {strides = array<i32>} : memref<16x32xf32, #tpu.memory_space<vmem>>, vector<16x32xf32>,
    %11 = vector.extract_strided_slice %8 {offsets = [0, 32], sizes = [16, 32], strides = [1, 1]} : vector<16x96xf32> to vector<16x32xf32>
    %c0_8 = arith.constant 0 : index
    %c0_9 = arith.constant 0 : index
    %12 = vector.load %arg14[%c0_8, %c0_9] : memref<16x32xf32, #tpu.memory_space<vmem>>, vector<16x32xf32>
    tpu.vector_store %arg14[%c0_8, %c0_9], %11 {strides = array<i32>} : memref<16x32xf32, #tpu.memory_space<vmem>>, vector<16x32xf32>,
    %13 = vector.extract_strided_slice %8 {offsets = [0, 64], sizes = [16, 32], strides = [1, 1]} : vector<16x96xf32> to vector<16x32xf32>
    %c0_10 = arith.constant 0 : index
    %c0_11 = arith.constant 0 : index
    %14 = vector.load %arg15[%c0_10, %c0_11] : memref<16x32xf32, #tpu.memory_space<vmem>>, vector<16x32xf32>
    tpu.vector_store %arg15[%c0_10, %c0_11], %13 {strides = array<i32>} : memref<16x32xf32, #tpu.memory_space<vmem>>, vector<16x32xf32>,
    %c0_12 = arith.constant 0 : index
    %c0_13 = arith.constant 0 : index
    %15 = vector.load %arg4[%c0_12, %c0_13] : memref<32x32xf32, #tpu.memory_space<vmem>>, vector<32x32xf32>
    %c0_14 = arith.constant 0 : index
    %c0_15 = arith.constant 0 : index
    %16 = vector.load %arg5[%c0_14, %c0_15] : memref<32x32xf32, #tpu.memory_space<vmem>>, vector<32x32xf32>
    %c0_16 = arith.constant 0 : index
    %c0_17 = arith.constant 0 : index
    %17 = vector.load %arg6[%c0_16, %c0_17] : memref<32x32xf32, #tpu.memory_space<vmem>>, vector<32x32xf32>
    %c0_18 = arith.constant 0 : index
    %c0_19 = arith.constant 0 : index
    %18 = vector.load %arg7[%c0_18, %c0_19] : memref<1x32xf32, #tpu.memory_space<vmem>>, vector<1x32xf32>
    %c0_20 = arith.constant 0 : index
    %c0_21 = arith.constant 0 : index
    %19 = vector.load %arg12[%c0_20, %c0_21] : memref<2x32xf32, #tpu.memory_space<vmem>>, vector<2x32xf32>
    %cst_22 = arith.constant dense<0.000000e+00> : vector<2x32xf32>
    %20 = tpu.matmul %19, %15, %cst_22 {dimension_numbers = #tpu.dot_dimension_numbers<[1], [0], [0], [1], [0, 0, 1, 1], [], []>} : vector<2x32xf32>, vector<32x32xf32>, vector<2x32xf32> -> vector<2x32xf32>
    %cst_23 = arith.constant dense<0.000000e+00> : vector<2x32xf32>
    %21 = tpu.matmul %19, %16, %cst_23 {dimension_numbers = #tpu.dot_dimension_numbers<[1], [0], [0], [1], [0, 0, 1, 1], [], []>} : vector<2x32xf32>, vector<32x32xf32>, vector<2x32xf32> -> vector<2x32xf32>
    %cst_24 = arith.constant dense<0.000000e+00> : vector<2x32xf32>
    %22 = tpu.matmul %19, %17, %cst_24 {dimension_numbers = #tpu.dot_dimension_numbers<[1], [0], [0], [1], [0, 0, 1, 1], [], []>} : vector<2x32xf32>, vector<32x32xf32>, vector<2x32xf32> -> vector<2x32xf32>
    %c0_25 = arith.constant 0 : index
    %c0_26 = arith.constant 0 : index
    %23 = vector.load %arg13[%c0_25, %c0_26] : memref<16x32xf32, #tpu.memory_space<vmem>>, vector<2x32xf32>
    %24 = arith.addf %23, %20 : vector<2x32xf32>
    %25 = arith.negf %24 : vector<2x32xf32>
    %26 = math.exp %25 : vector<2x32xf32>
    %cst_27 = arith.constant 1.000000e+00 : f32
    %27 = vector.broadcast %cst_27 : f32 to vector<2x32xf32>
    %28 = arith.addf %27, %26 : vector<2x32xf32>
    %29 = arith.divf %27, %28 : vector<2x32xf32>
    %c0_28 = arith.constant 0 : index
    %c0_29 = arith.constant 0 : index
    %30 = vector.load %arg14[%c0_28, %c0_29] : memref<16x32xf32, #tpu.memory_space<vmem>>, vector<2x32xf32>
    %31 = arith.addf %30, %21 : vector<2x32xf32>
    %32 = arith.negf %31 : vector<2x32xf32>
    %33 = math.exp %32 : vector<2x32xf32>
    %cst_30 = arith.constant 1.000000e+00 : f32
    %34 = vector.broadcast %cst_30 : f32 to vector<2x32xf32>
    %35 = arith.addf %34, %33 : vector<2x32xf32>
    %36 = arith.divf %34, %35 : vector<2x32xf32>
    %c0_31 = arith.constant 0 : index
    %c0_32 = arith.constant 0 : index
    %37 = vector.load %arg15[%c0_31, %c0_32] : memref<16x32xf32, #tpu.memory_space<vmem>>, vector<2x32xf32>
    %38 = vector.broadcast %18 : vector<1x32xf32> to vector<2x32xf32>
    %39 = arith.addf %22, %38 : vector<2x32xf32>
    %40 = arith.mulf %29, %39 : vector<2x32xf32>
    %41 = arith.addf %37, %40 : vector<2x32xf32>
    %42 = math.tanh %41 : vector<2x32xf32>
    %cst_33 = arith.constant 1.000000e+00 : f32
    %43 = vector.broadcast %cst_33 : f32 to vector<2x32xf32>
    %44 = arith.subf %43, %36 : vector<2x32xf32>
    %45 = arith.mulf %44, %42 : vector<2x32xf32>
    %46 = arith.mulf %36, %19 : vector<2x32xf32>
    %47 = arith.addf %45, %46 : vector<2x32xf32>
    %c0_34 = arith.constant 0 : index
    %c0_35 = arith.constant 0 : index
    %48 = vector.load %arg11[%c0_34, %c0_35] : memref<16x32xf32, #tpu.memory_space<vmem>>, vector<2x32xf32>
    tpu.vector_store %arg11[%c0_34, %c0_35], %47 {strides = array<i32>} : memref<16x32xf32, #tpu.memory_space<vmem>>, vector<2x32xf32>,
    %cst_36 = arith.constant dense<0.000000e+00> : vector<2x32xf32>
    %49 = tpu.matmul %47, %15, %cst_36 {dimension_numbers = #tpu.dot_dimension_numbers<[1], [0], [0], [1], [0, 0, 1, 1], [], []>} : vector<2x32xf32>, vector<32x32xf32>, vector<2x32xf32> -> vector<2x32xf32>
    %cst_37 = arith.constant dense<0.000000e+00> : vector<2x32xf32>
    %50 = tpu.matmul %47, %16, %cst_37 {dimension_numbers = #tpu.dot_dimension_numbers<[1], [0], [0], [1], [0, 0, 1, 1], [], []>} : vector<2x32xf32>, vector<32x32xf32>, vector<2x32xf32> -> vector<2x32xf32>
    %cst_38 = arith.constant dense<0.000000e+00> : vector<2x32xf32>
    %51 = tpu.matmul %47, %17, %cst_38 {dimension_numbers = #tpu.dot_dimension_numbers<[1], [0], [0], [1], [0, 0, 1, 1], [], []>} : vector<2x32xf32>, vector<32x32xf32>, vector<2x32xf32> -> vector<2x32xf32>
    %c2 = arith.constant 2 : index
    %c0_39 = arith.constant 0 : index
    %52 = vector.load %arg13[%c2, %c0_39] : memref<16x32xf32, #tpu.memory_space<vmem>>, vector<2x32xf32>
    %53 = arith.addf %52, %49 : vector<2x32xf32>
    %54 = arith.negf %53 : vector<2x32xf32>
    %55 = math.exp %54 : vector<2x32xf32>
    %cst_40 = arith.constant 1.000000e+00 : f32
    %56 = vector.broadcast %cst_40 : f32 to vector<2x32xf32>
    %57 = arith.addf %56, %55 : vector<2x32xf32>
    %58 = arith.divf %56, %57 : vector<2x32xf32>
    %c2_41 = arith.constant 2 : index
    %c0_42 = arith.constant 0 : index
    %59 = vector.load %arg14[%c2_41, %c0_42] : memref<16x32xf32, #tpu.memory_space<vmem>>, vector<2x32xf32>
    %60 = arith.addf %59, %50 : vector<2x32xf32>
    %61 = arith.negf %60 : vector<2x32xf32>
    %62 = math.exp %61 : vector<2x32xf32>
    %cst_43 = arith.constant 1.000000e+00 : f32
    %63 = vector.broadcast %cst_43 : f32 to vector<2x32xf32>
    %64 = arith.addf %63, %62 : vector<2x32xf32>
    %65 = arith.divf %63, %64 : vector<2x32xf32>
    %c2_44 = arith.constant 2 : index
    %c0_45 = arith.constant 0 : index
    %66 = vector.load %arg15[%c2_44, %c0_45] : memref<16x32xf32, #tpu.memory_space<vmem>>, vector<2x32xf32>
    %67 = vector.broadcast %18 : vector<1x32xf32> to vector<2x32xf32>
    %68 = arith.addf %51, %67 : vector<2x32xf32>
    %69 = arith.mulf %58, %68 : vector<2x32xf32>
    %70 = arith.addf %66, %69 : vector<2x32xf32>
    %71 = math.tanh %70 : vector<2x32xf32>
    %cst_46 = arith.constant 1.000000e+00 : f32
    %72 = vector.broadcast %cst_46 : f32 to vector<2x32xf32>
    %73 = arith.subf %72, %65 : vector<2x32xf32>
    %74 = arith.mulf %73, %71 : vector<2x32xf32>
    %75 = arith.mulf %65, %47 : vector<2x32xf32>
    %76 = arith.addf %74, %75 : vector<2x32xf32>
    %c2_47 = arith.constant 2 : index
    %c0_48 = arith.constant 0 : index
    %77 = vector.load %arg11[%c2_47, %c0_48] : memref<16x32xf32, #tpu.memory_space<vmem>>, vector<2x32xf32>
    tpu.vector_store %arg11[%c2_47, %c0_48], %76 {strides = array<i32>} : memref<16x32xf32, #tpu.memory_space<vmem>>, vector<2x32xf32>,
    %cst_49 = arith.constant dense<0.000000e+00> : vector<2x32xf32>
    %78 = tpu.matmul %76, %15, %cst_49 {dimension_numbers = #tpu.dot_dimension_numbers<[1], [0], [0], [1], [0, 0, 1, 1], [], []>} : vector<2x32xf32>, vector<32x32xf32>, vector<2x32xf32> -> vector<2x32xf32>
    %cst_50 = arith.constant dense<0.000000e+00> : vector<2x32xf32>
    %79 = tpu.matmul %76, %16, %cst_50 {dimension_numbers = #tpu.dot_dimension_numbers<[1], [0], [0], [1], [0, 0, 1, 1], [], []>} : vector<2x32xf32>, vector<32x32xf32>, vector<2x32xf32> -> vector<2x32xf32>
    %cst_51 = arith.constant dense<0.000000e+00> : vector<2x32xf32>
    %80 = tpu.matmul %76, %17, %cst_51 {dimension_numbers = #tpu.dot_dimension_numbers<[1], [0], [0], [1], [0, 0, 1, 1], [], []>} : vector<2x32xf32>, vector<32x32xf32>, vector<2x32xf32> -> vector<2x32xf32>
    %c4 = arith.constant 4 : index
    %c0_52 = arith.constant 0 : index
    %81 = vector.load %arg13[%c4, %c0_52] : memref<16x32xf32, #tpu.memory_space<vmem>>, vector<2x32xf32>
    %82 = arith.addf %81, %78 : vector<2x32xf32>
    %83 = arith.negf %82 : vector<2x32xf32>
    %84 = math.exp %83 : vector<2x32xf32>
    %cst_53 = arith.constant 1.000000e+00 : f32
    %85 = vector.broadcast %cst_53 : f32 to vector<2x32xf32>
    %86 = arith.addf %85, %84 : vector<2x32xf32>
    %87 = arith.divf %85, %86 : vector<2x32xf32>
    %c4_54 = arith.constant 4 : index
    %c0_55 = arith.constant 0 : index
    %88 = vector.load %arg14[%c4_54, %c0_55] : memref<16x32xf32, #tpu.memory_space<vmem>>, vector<2x32xf32>
    %89 = arith.addf %88, %79 : vector<2x32xf32>
    %90 = arith.negf %89 : vector<2x32xf32>
    %91 = math.exp %90 : vector<2x32xf32>
    %cst_56 = arith.constant 1.000000e+00 : f32
    %92 = vector.broadcast %cst_56 : f32 to vector<2x32xf32>
    %93 = arith.addf %92, %91 : vector<2x32xf32>
    %94 = arith.divf %92, %93 : vector<2x32xf32>
    %c4_57 = arith.constant 4 : index
    %c0_58 = arith.constant 0 : index
    %95 = vector.load %arg15[%c4_57, %c0_58] : memref<16x32xf32, #tpu.memory_space<vmem>>, vector<2x32xf32>
    %96 = vector.broadcast %18 : vector<1x32xf32> to vector<2x32xf32>
    %97 = arith.addf %80, %96 : vector<2x32xf32>
    %98 = arith.mulf %87, %97 : vector<2x32xf32>
    %99 = arith.addf %95, %98 : vector<2x32xf32>
    %100 = math.tanh %99 : vector<2x32xf32>
    %cst_59 = arith.constant 1.000000e+00 : f32
    %101 = vector.broadcast %cst_59 : f32 to vector<2x32xf32>
    %102 = arith.subf %101, %94 : vector<2x32xf32>
    %103 = arith.mulf %102, %100 : vector<2x32xf32>
    %104 = arith.mulf %94, %76 : vector<2x32xf32>
    %105 = arith.addf %103, %104 : vector<2x32xf32>
    %c4_60 = arith.constant 4 : index
    %c0_61 = arith.constant 0 : index
    %106 = vector.load %arg11[%c4_60, %c0_61] : memref<16x32xf32, #tpu.memory_space<vmem>>, vector<2x32xf32>
    tpu.vector_store %arg11[%c4_60, %c0_61], %105 {strides = array<i32>} : memref<16x32xf32, #tpu.memory_space<vmem>>, vector<2x32xf32>,
    %cst_62 = arith.constant dense<0.000000e+00> : vector<2x32xf32>
    %107 = tpu.matmul %105, %15, %cst_62 {dimension_numbers = #tpu.dot_dimension_numbers<[1], [0], [0], [1], [0, 0, 1, 1], [], []>} : vector<2x32xf32>, vector<32x32xf32>, vector<2x32xf32> -> vector<2x32xf32>
    %cst_63 = arith.constant dense<0.000000e+00> : vector<2x32xf32>
    %108 = tpu.matmul %105, %16, %cst_63 {dimension_numbers = #tpu.dot_dimension_numbers<[1], [0], [0], [1], [0, 0, 1, 1], [], []>} : vector<2x32xf32>, vector<32x32xf32>, vector<2x32xf32> -> vector<2x32xf32>
    %cst_64 = arith.constant dense<0.000000e+00> : vector<2x32xf32>
    %109 = tpu.matmul %105, %17, %cst_64 {dimension_numbers = #tpu.dot_dimension_numbers<[1], [0], [0], [1], [0, 0, 1, 1], [], []>} : vector<2x32xf32>, vector<32x32xf32>, vector<2x32xf32> -> vector<2x32xf32>
    %c6 = arith.constant 6 : index
    %c0_65 = arith.constant 0 : index
    %110 = vector.load %arg13[%c6, %c0_65] : memref<16x32xf32, #tpu.memory_space<vmem>>, vector<2x32xf32>
    %111 = arith.addf %110, %107 : vector<2x32xf32>
    %112 = arith.negf %111 : vector<2x32xf32>
    %113 = math.exp %112 : vector<2x32xf32>
    %cst_66 = arith.constant 1.000000e+00 : f32
    %114 = vector.broadcast %cst_66 : f32 to vector<2x32xf32>
    %115 = arith.addf %114, %113 : vector<2x32xf32>
    %116 = arith.divf %114, %115 : vector<2x32xf32>
    %c6_67 = arith.constant 6 : index
    %c0_68 = arith.constant 0 : index
    %117 = vector.load %arg14[%c6_67, %c0_68] : memref<16x32xf32, #tpu.memory_space<vmem>>, vector<2x32xf32>
    %118 = arith.addf %117, %108 : vector<2x32xf32>
    %119 = arith.negf %118 : vector<2x32xf32>
    %120 = math.exp %119 : vector<2x32xf32>
    %cst_69 = arith.constant 1.000000e+00 : f32
    %121 = vector.broadcast %cst_69 : f32 to vector<2x32xf32>
    %122 = arith.addf %121, %120 : vector<2x32xf32>
    %123 = arith.divf %121, %122 : vector<2x32xf32>
    %c6_70 = arith.constant 6 : index
    %c0_71 = arith.constant 0 : index
    %124 = vector.load %arg15[%c6_70, %c0_71] : memref<16x32xf32, #tpu.memory_space<vmem>>, vector<2x32xf32>
    %125 = vector.broadcast %18 : vector<1x32xf32> to vector<2x32xf32>
    %126 = arith.addf %109, %125 : vector<2x32xf32>
    %127 = arith.mulf %116, %126 : vector<2x32xf32>
    %128 = arith.addf %124, %127 : vector<2x32xf32>
    %129 = math.tanh %128 : vector<2x32xf32>
    %cst_72 = arith.constant 1.000000e+00 : f32
    %130 = vector.broadcast %cst_72 : f32 to vector<2x32xf32>
    %131 = arith.subf %130, %123 : vector<2x32xf32>
    %132 = arith.mulf %131, %129 : vector<2x32xf32>
    %133 = arith.mulf %123, %105 : vector<2x32xf32>
    %134 = arith.addf %132, %133 : vector<2x32xf32>
    %c6_73 = arith.constant 6 : index
    %c0_74 = arith.constant 0 : index
    %135 = vector.load %arg11[%c6_73, %c0_74] : memref<16x32xf32, #tpu.memory_space<vmem>>, vector<2x32xf32>
    tpu.vector_store %arg11[%c6_73, %c0_74], %134 {strides = array<i32>} : memref<16x32xf32, #tpu.memory_space<vmem>>, vector<2x32xf32>,
    %cst_75 = arith.constant dense<0.000000e+00> : vector<2x32xf32>
    %136 = tpu.matmul %134, %15, %cst_75 {dimension_numbers = #tpu.dot_dimension_numbers<[1], [0], [0], [1], [0, 0, 1, 1], [], []>} : vector<2x32xf32>, vector<32x32xf32>, vector<2x32xf32> -> vector<2x32xf32>
    %cst_76 = arith.constant dense<0.000000e+00> : vector<2x32xf32>
    %137 = tpu.matmul %134, %16, %cst_76 {dimension_numbers = #tpu.dot_dimension_numbers<[1], [0], [0], [1], [0, 0, 1, 1], [], []>} : vector<2x32xf32>, vector<32x32xf32>, vector<2x32xf32> -> vector<2x32xf32>
    %cst_77 = arith.constant dense<0.000000e+00> : vector<2x32xf32>
    %138 = tpu.matmul %134, %17, %cst_77 {dimension_numbers = #tpu.dot_dimension_numbers<[1], [0], [0], [1], [0, 0, 1, 1], [], []>} : vector<2x32xf32>, vector<32x32xf32>, vector<2x32xf32> -> vector<2x32xf32>
    %c8 = arith.constant 8 : index
    %c0_78 = arith.constant 0 : index
    %139 = vector.load %arg13[%c8, %c0_78] : memref<16x32xf32, #tpu.memory_space<vmem>>, vector<2x32xf32>
    %140 = arith.addf %139, %136 : vector<2x32xf32>
    %141 = arith.negf %140 : vector<2x32xf32>
    %142 = math.exp %141 : vector<2x32xf32>
    %cst_79 = arith.constant 1.000000e+00 : f32
    %143 = vector.broadcast %cst_79 : f32 to vector<2x32xf32>
    %144 = arith.addf %143, %142 : vector<2x32xf32>
    %145 = arith.divf %143, %144 : vector<2x32xf32>
    %c8_80 = arith.constant 8 : index
    %c0_81 = arith.constant 0 : index
    %146 = vector.load %arg14[%c8_80, %c0_81] : memref<16x32xf32, #tpu.memory_space<vmem>>, vector<2x32xf32>
    %147 = arith.addf %146, %137 : vector<2x32xf32>
    %148 = arith.negf %147 : vector<2x32xf32>
    %149 = math.exp %148 : vector<2x32xf32>
    %cst_82 = arith.constant 1.000000e+00 : f32
    %150 = vector.broadcast %cst_82 : f32 to vector<2x32xf32>
    %151 = arith.addf %150, %149 : vector<2x32xf32>
    %152 = arith.divf %150, %151 : vector<2x32xf32>
    %c8_83 = arith.constant 8 : index
    %c0_84 = arith.constant 0 : index
    %153 = vector.load %arg15[%c8_83, %c0_84] : memref<16x32xf32, #tpu.memory_space<vmem>>, vector<2x32xf32>
    %154 = vector.broadcast %18 : vector<1x32xf32> to vector<2x32xf32>
    %155 = arith.addf %138, %154 : vector<2x32xf32>
    %156 = arith.mulf %145, %155 : vector<2x32xf32>
    %157 = arith.addf %153, %156 : vector<2x32xf32>
    %158 = math.tanh %157 : vector<2x32xf32>
    %cst_85 = arith.constant 1.000000e+00 : f32
    %159 = vector.broadcast %cst_85 : f32 to vector<2x32xf32>
    %160 = arith.subf %159, %152 : vector<2x32xf32>
    %161 = arith.mulf %160, %158 : vector<2x32xf32>
    %162 = arith.mulf %152, %134 : vector<2x32xf32>
    %163 = arith.addf %161, %162 : vector<2x32xf32>
    %c8_86 = arith.constant 8 : index
    %c0_87 = arith.constant 0 : index
    %164 = vector.load %arg11[%c8_86, %c0_87] : memref<16x32xf32, #tpu.memory_space<vmem>>, vector<2x32xf32>
    tpu.vector_store %arg11[%c8_86, %c0_87], %163 {strides = array<i32>} : memref<16x32xf32, #tpu.memory_space<vmem>>, vector<2x32xf32>,
    %cst_88 = arith.constant dense<0.000000e+00> : vector<2x32xf32>
    %165 = tpu.matmul %163, %15, %cst_88 {dimension_numbers = #tpu.dot_dimension_numbers<[1], [0], [0], [1], [0, 0, 1, 1], [], []>} : vector<2x32xf32>, vector<32x32xf32>, vector<2x32xf32> -> vector<2x32xf32>
    %cst_89 = arith.constant dense<0.000000e+00> : vector<2x32xf32>
    %166 = tpu.matmul %163, %16, %cst_89 {dimension_numbers = #tpu.dot_dimension_numbers<[1], [0], [0], [1], [0, 0, 1, 1], [], []>} : vector<2x32xf32>, vector<32x32xf32>, vector<2x32xf32> -> vector<2x32xf32>
    %cst_90 = arith.constant dense<0.000000e+00> : vector<2x32xf32>
    %167 = tpu.matmul %163, %17, %cst_90 {dimension_numbers = #tpu.dot_dimension_numbers<[1], [0], [0], [1], [0, 0, 1, 1], [], []>} : vector<2x32xf32>, vector<32x32xf32>, vector<2x32xf32> -> vector<2x32xf32>
    %c10 = arith.constant 10 : index
    %c0_91 = arith.constant 0 : index
    %168 = vector.load %arg13[%c10, %c0_91] : memref<16x32xf32, #tpu.memory_space<vmem>>, vector<2x32xf32>
    %169 = arith.addf %168, %165 : vector<2x32xf32>
    %170 = arith.negf %169 : vector<2x32xf32>
    %171 = math.exp %170 : vector<2x32xf32>
    %cst_92 = arith.constant 1.000000e+00 : f32
    %172 = vector.broadcast %cst_92 : f32 to vector<2x32xf32>
    %173 = arith.addf %172, %171 : vector<2x32xf32>
    %174 = arith.divf %172, %173 : vector<2x32xf32>
    %c10_93 = arith.constant 10 : index
    %c0_94 = arith.constant 0 : index
    %175 = vector.load %arg14[%c10_93, %c0_94] : memref<16x32xf32, #tpu.memory_space<vmem>>, vector<2x32xf32>
    %176 = arith.addf %175, %166 : vector<2x32xf32>
    %177 = arith.negf %176 : vector<2x32xf32>
    %178 = math.exp %177 : vector<2x32xf32>
    %cst_95 = arith.constant 1.000000e+00 : f32
    %179 = vector.broadcast %cst_95 : f32 to vector<2x32xf32>
    %180 = arith.addf %179, %178 : vector<2x32xf32>
    %181 = arith.divf %179, %180 : vector<2x32xf32>
    %c10_96 = arith.constant 10 : index
    %c0_97 = arith.constant 0 : index
    %182 = vector.load %arg15[%c10_96, %c0_97] : memref<16x32xf32, #tpu.memory_space<vmem>>, vector<2x32xf32>
    %183 = vector.broadcast %18 : vector<1x32xf32> to vector<2x32xf32>
    %184 = arith.addf %167, %183 : vector<2x32xf32>
    %185 = arith.mulf %174, %184 : vector<2x32xf32>
    %186 = arith.addf %182, %185 : vector<2x32xf32>
    %187 = math.tanh %186 : vector<2x32xf32>
    %cst_98 = arith.constant 1.000000e+00 : f32
    %188 = vector.broadcast %cst_98 : f32 to vector<2x32xf32>
    %189 = arith.subf %188, %181 : vector<2x32xf32>
    %190 = arith.mulf %189, %187 : vector<2x32xf32>
    %191 = arith.mulf %181, %163 : vector<2x32xf32>
    %192 = arith.addf %190, %191 : vector<2x32xf32>
    %c10_99 = arith.constant 10 : index
    %c0_100 = arith.constant 0 : index
    %193 = vector.load %arg11[%c10_99, %c0_100] : memref<16x32xf32, #tpu.memory_space<vmem>>, vector<2x32xf32>
    tpu.vector_store %arg11[%c10_99, %c0_100], %192 {strides = array<i32>} : memref<16x32xf32, #tpu.memory_space<vmem>>, vector<2x32xf32>,
    %cst_101 = arith.constant dense<0.000000e+00> : vector<2x32xf32>
    %194 = tpu.matmul %192, %15, %cst_101 {dimension_numbers = #tpu.dot_dimension_numbers<[1], [0], [0], [1], [0, 0, 1, 1], [], []>} : vector<2x32xf32>, vector<32x32xf32>, vector<2x32xf32> -> vector<2x32xf32>
    %cst_102 = arith.constant dense<0.000000e+00> : vector<2x32xf32>
    %195 = tpu.matmul %192, %16, %cst_102 {dimension_numbers = #tpu.dot_dimension_numbers<[1], [0], [0], [1], [0, 0, 1, 1], [], []>} : vector<2x32xf32>, vector<32x32xf32>, vector<2x32xf32> -> vector<2x32xf32>
    %cst_103 = arith.constant dense<0.000000e+00> : vector<2x32xf32>
    %196 = tpu.matmul %192, %17, %cst_103 {dimension_numbers = #tpu.dot_dimension_numbers<[1], [0], [0], [1], [0, 0, 1, 1], [], []>} : vector<2x32xf32>, vector<32x32xf32>, vector<2x32xf32> -> vector<2x32xf32>
    %c12 = arith.constant 12 : index
    %c0_104 = arith.constant 0 : index
    %197 = vector.load %arg13[%c12, %c0_104] : memref<16x32xf32, #tpu.memory_space<vmem>>, vector<2x32xf32>
    %198 = arith.addf %197, %194 : vector<2x32xf32>
    %199 = arith.negf %198 : vector<2x32xf32>
    %200 = math.exp %199 : vector<2x32xf32>
    %cst_105 = arith.constant 1.000000e+00 : f32
    %201 = vector.broadcast %cst_105 : f32 to vector<2x32xf32>
    %202 = arith.addf %201, %200 : vector<2x32xf32>
    %203 = arith.divf %201, %202 : vector<2x32xf32>
    %c12_106 = arith.constant 12 : index
    %c0_107 = arith.constant 0 : index
    %204 = vector.load %arg14[%c12_106, %c0_107] : memref<16x32xf32, #tpu.memory_space<vmem>>, vector<2x32xf32>
    %205 = arith.addf %204, %195 : vector<2x32xf32>
    %206 = arith.negf %205 : vector<2x32xf32>
    %207 = math.exp %206 : vector<2x32xf32>
    %cst_108 = arith.constant 1.000000e+00 : f32
    %208 = vector.broadcast %cst_108 : f32 to vector<2x32xf32>
    %209 = arith.addf %208, %207 : vector<2x32xf32>
    %210 = arith.divf %208, %209 : vector<2x32xf32>
    %c12_109 = arith.constant 12 : index
    %c0_110 = arith.constant 0 : index
    %211 = vector.load %arg15[%c12_109, %c0_110] : memref<16x32xf32, #tpu.memory_space<vmem>>, vector<2x32xf32>
    %212 = vector.broadcast %18 : vector<1x32xf32> to vector<2x32xf32>
    %213 = arith.addf %196, %212 : vector<2x32xf32>
    %214 = arith.mulf %203, %213 : vector<2x32xf32>
    %215 = arith.addf %211, %214 : vector<2x32xf32>
    %216 = math.tanh %215 : vector<2x32xf32>
    %cst_111 = arith.constant 1.000000e+00 : f32
    %217 = vector.broadcast %cst_111 : f32 to vector<2x32xf32>
    %218 = arith.subf %217, %210 : vector<2x32xf32>
    %219 = arith.mulf %218, %216 : vector<2x32xf32>
    %220 = arith.mulf %210, %192 : vector<2x32xf32>
    %221 = arith.addf %219, %220 : vector<2x32xf32>
    %c12_112 = arith.constant 12 : index
    %c0_113 = arith.constant 0 : index
    %222 = vector.load %arg11[%c12_112, %c0_113] : memref<16x32xf32, #tpu.memory_space<vmem>>, vector<2x32xf32>
    tpu.vector_store %arg11[%c12_112, %c0_113], %221 {strides = array<i32>} : memref<16x32xf32, #tpu.memory_space<vmem>>, vector<2x32xf32>,
    %cst_114 = arith.constant dense<0.000000e+00> : vector<2x32xf32>
    %223 = tpu.matmul %221, %15, %cst_114 {dimension_numbers = #tpu.dot_dimension_numbers<[1], [0], [0], [1], [0, 0, 1, 1], [], []>} : vector<2x32xf32>, vector<32x32xf32>, vector<2x32xf32> -> vector<2x32xf32>
    %cst_115 = arith.constant dense<0.000000e+00> : vector<2x32xf32>
    %224 = tpu.matmul %221, %16, %cst_115 {dimension_numbers = #tpu.dot_dimension_numbers<[1], [0], [0], [1], [0, 0, 1, 1], [], []>} : vector<2x32xf32>, vector<32x32xf32>, vector<2x32xf32> -> vector<2x32xf32>
    %cst_116 = arith.constant dense<0.000000e+00> : vector<2x32xf32>
    %225 = tpu.matmul %221, %17, %cst_116 {dimension_numbers = #tpu.dot_dimension_numbers<[1], [0], [0], [1], [0, 0, 1, 1], [], []>} : vector<2x32xf32>, vector<32x32xf32>, vector<2x32xf32> -> vector<2x32xf32>
    %c14 = arith.constant 14 : index
    %c0_117 = arith.constant 0 : index
    %226 = vector.load %arg13[%c14, %c0_117] : memref<16x32xf32, #tpu.memory_space<vmem>>, vector<2x32xf32>
    %227 = arith.addf %226, %223 : vector<2x32xf32>
    %228 = arith.negf %227 : vector<2x32xf32>
    %229 = math.exp %228 : vector<2x32xf32>
    %cst_118 = arith.constant 1.000000e+00 : f32
    %230 = vector.broadcast %cst_118 : f32 to vector<2x32xf32>
    %231 = arith.addf %230, %229 : vector<2x32xf32>
    %232 = arith.divf %230, %231 : vector<2x32xf32>
    %c14_119 = arith.constant 14 : index
    %c0_120 = arith.constant 0 : index
    %233 = vector.load %arg14[%c14_119, %c0_120] : memref<16x32xf32, #tpu.memory_space<vmem>>, vector<2x32xf32>
    %234 = arith.addf %233, %224 : vector<2x32xf32>
    %235 = arith.negf %234 : vector<2x32xf32>
    %236 = math.exp %235 : vector<2x32xf32>
    %cst_121 = arith.constant 1.000000e+00 : f32
    %237 = vector.broadcast %cst_121 : f32 to vector<2x32xf32>
    %238 = arith.addf %237, %236 : vector<2x32xf32>
    %239 = arith.divf %237, %238 : vector<2x32xf32>
    %c14_122 = arith.constant 14 : index
    %c0_123 = arith.constant 0 : index
    %240 = vector.load %arg15[%c14_122, %c0_123] : memref<16x32xf32, #tpu.memory_space<vmem>>, vector<2x32xf32>
    %241 = vector.broadcast %18 : vector<1x32xf32> to vector<2x32xf32>
    %242 = arith.addf %225, %241 : vector<2x32xf32>
    %243 = arith.mulf %232, %242 : vector<2x32xf32>
    %244 = arith.addf %240, %243 : vector<2x32xf32>
    %245 = math.tanh %244 : vector<2x32xf32>
    %cst_124 = arith.constant 1.000000e+00 : f32
    %246 = vector.broadcast %cst_124 : f32 to vector<2x32xf32>
    %247 = arith.subf %246, %239 : vector<2x32xf32>
    %248 = arith.mulf %247, %245 : vector<2x32xf32>
    %249 = arith.mulf %239, %221 : vector<2x32xf32>
    %250 = arith.addf %248, %249 : vector<2x32xf32>
    %c14_125 = arith.constant 14 : index
    %c0_126 = arith.constant 0 : index
    %251 = vector.load %arg11[%c14_125, %c0_126] : memref<16x32xf32, #tpu.memory_space<vmem>>, vector<2x32xf32>
    tpu.vector_store %arg11[%c14_125, %c0_126], %250 {strides = array<i32>} : memref<16x32xf32, #tpu.memory_space<vmem>>, vector<2x32xf32>,
    %c0_127 = arith.constant 0 : index
    %c0_128 = arith.constant 0 : index
    %252 = vector.load %arg12[%c0_127, %c0_128] : memref<2x32xf32, #tpu.memory_space<vmem>>, vector<2x32xf32>
    tpu.vector_store %arg12[%c0_127, %c0_128], %250 {strides = array<i32>} : memref<2x32xf32, #tpu.memory_space<vmem>>, vector<2x32xf32>,
    %c0_129 = arith.constant 0 : index
    %c0_130 = arith.constant 0 : index
    %253 = vector.load %arg11[%c0_129, %c0_130] : memref<16x32xf32, #tpu.memory_space<vmem>>, vector<16x32xf32>
    %254 = arith.truncf %253 : vector<16x32xf32> to vector<16x32xbf16>
    %c0_131 = arith.constant 0 : index
    %c0_132 = arith.constant 0 : index
    %255 = vector.load %arg8[%c0_131, %c0_132] : memref<32x8xbf16, #tpu.memory_space<vmem>>, vector<32x8xbf16>
    %cst_133 = arith.constant dense<0.000000e+00> : vector<16x8xf32>
    %256 = tpu.matmul %254, %255, %cst_133 {dimension_numbers = #tpu.dot_dimension_numbers<[1], [0], [0], [1], [0, 0, 1, 1], [], []>} : vector<16x32xbf16>, vector<32x8xbf16>, vector<16x8xf32> -> vector<16x8xf32>
    %c0_134 = arith.constant 0 : index
    %c0_135 = arith.constant 0 : index
    %257 = vector.load %arg9[%c0_134, %c0_135] : memref<1x8xf32, #tpu.memory_space<vmem>>, vector<1x8xf32>
    %258 = vector.broadcast %257 : vector<1x8xf32> to vector<16x8xf32>
    %259 = arith.addf %256, %258 : vector<16x8xf32>
    %c0_136 = arith.constant 0 : index
    %c0_137 = arith.constant 0 : index
    %260 = vector.load %arg10[%c0_136, %c0_137] : memref<16x8xf32, #tpu.memory_space<vmem>>, vector<16x8xf32>
    tpu.vector_store %arg10[%c0_136, %c0_137], %259 {strides = array<i32>} : memref<16x8xf32, #tpu.memory_space<vmem>>, vector<16x8xf32>,
    return
  }
  func.func @transform_0(%arg0: i32) -> (i32, i32) {
    %c0_i32 = arith.constant 0 : i32
    %c0_i32_0 = arith.constant 0 : i32
    return %arg0, %c0_i32 : i32, i32
  }
  func.func @transform_1(%arg0: i32) -> (i32, i32) {
    %c0_i32 = arith.constant 0 : i32
    %c0_i32_0 = arith.constant 0 : i32
    %c0_i32_1 = arith.constant 0 : i32
    return %c0_i32, %c0_i32_0 : i32, i32
  }
  func.func @transform_2(%arg0: i32) -> (i32, i32) {
    %c0_i32 = arith.constant 0 : i32
    %c0_i32_0 = arith.constant 0 : i32
    %c0_i32_1 = arith.constant 0 : i32
    return %c0_i32, %c0_i32_0 : i32, i32
  }
  func.func @transform_3(%arg0: i32) -> (i32, i32) {
    %c0_i32 = arith.constant 0 : i32
    %c0_i32_0 = arith.constant 0 : i32
    %c0_i32_1 = arith.constant 0 : i32
    return %c0_i32, %c0_i32_0 : i32, i32
  }
  func.func @transform_4(%arg0: i32) -> (i32, i32) {
    %c0_i32 = arith.constant 0 : i32
    %c0_i32_0 = arith.constant 0 : i32
    %c0_i32_1 = arith.constant 0 : i32
    return %c0_i32, %c0_i32_0 : i32, i32
  }
  func.func @transform_5(%arg0: i32) -> (i32, i32) {
    %c0_i32 = arith.constant 0 : i32
    %c0_i32_0 = arith.constant 0 : i32
    %c0_i32_1 = arith.constant 0 : i32
    return %c0_i32, %c0_i32_0 : i32, i32
  }
  func.func @transform_6(%arg0: i32) -> (i32, i32) {
    %c0_i32 = arith.constant 0 : i32
    %c0_i32_0 = arith.constant 0 : i32
    %c0_i32_1 = arith.constant 0 : i32
    return %c0_i32, %c0_i32_0 : i32, i32
  }
  func.func @transform_7(%arg0: i32) -> (i32, i32) {
    %c0_i32 = arith.constant 0 : i32
    %c0_i32_0 = arith.constant 0 : i32
    %c0_i32_1 = arith.constant 0 : i32
    return %c0_i32, %c0_i32_0 : i32, i32
  }
  func.func @transform_8(%arg0: i32) -> (i32, i32) {
    %c0_i32 = arith.constant 0 : i32
    %c0_i32_0 = arith.constant 0 : i32
    %c0_i32_1 = arith.constant 0 : i32
    return %c0_i32, %c0_i32_0 : i32, i32
  }
  func.func @transform_9(%arg0: i32) -> (i32, i32) {
    %c0_i32 = arith.constant 0 : i32
    %c0_i32_0 = arith.constant 0 : i32
    return %arg0, %c0_i32 : i32, i32
  }
  func.func @transform_10(%arg0: i32) -> (i32, i32) {
    %c0_i32 = arith.constant 0 : i32
    %c0_i32_0 = arith.constant 0 : i32
    return %arg0, %c0_i32 : i32, i32
  }
}

</mosaic_0001>

<llo_original>
// kernel: gating_encoder_forward.1
$region0: #{gating_encoder_forward.1}
  #allocation0 [shape = 'u32[]', space=smem, size = 0x4, offset = 0x4, fixed_abs, tag = 'smem constant byte address 0x4 - core index']
  #allocation1 [shape = 'u32[144,128]{1,0:T(1,128)}', space=vmem, size = 0x12000, scoped, tag = 'internal scratch']
  #allocation2 [shape = 'f32[2,32]{1,0:T(2,128)}', space=vmem, size = 0x400, scoped, tag = 'scratch operand']
  #allocation3 [shape = 'f32[16,32]{1,0:T(8,128)}', space=vmem, size = 0x2000, scoped, tag = 'scratch operand']
  #allocation4 [shape = 'f32[16,32]{1,0:T(8,128)}', space=vmem, size = 0x2000, scoped, tag = 'scratch operand']
  #allocation5 [shape = 'f32[16,32]{1,0:T(8,128)}', space=vmem, size = 0x2000, scoped, tag = 'scratch operand']
  %s0 = inlined_call_operand.vmem [shape: bf16[16,44], index: 0, kind: input, shape index: {}]
  %s1 = inlined_call_operand.vmem [shape: bf16[44,96], index: 1, kind: input, shape index: {}]
  %s2 = inlined_call_operand.vmem [shape: f32[1,96], index: 2, kind: input, shape index: {}]
  %s3 = inlined_call_operand.vmem [shape: f32[32,32], index: 3, kind: input, shape index: {}]
  %s4 = inlined_call_operand.vmem [shape: f32[32,32], index: 4, kind: input, shape index: {}]
  %s5 = inlined_call_operand.vmem [shape: f32[32,32], index: 5, kind: input, shape index: {}]
  %s6 = inlined_call_operand.vmem [shape: f32[1,32], index: 6, kind: input, shape index: {}]
  %s7 = inlined_call_operand.vmem [shape: bf16[32,8], index: 7, kind: input, shape index: {}]
  %s8 = inlined_call_operand.vmem [shape: f32[1,8], index: 8, kind: input, shape index: {}]
  %s9 = inlined_call_operand.hbm [shape: f32[16,8], index: 9, kind: output, shape index: {0}]
  %s10 = inlined_call_operand.hbm [shape: f32[16,32], index: 10, kind: output, shape index: {1}]
  %11 = xla_tuple %s9, %s10
  %s12 = sld [smem:[#allocation0]]
  $region58: #{gating_encoder_forward.1} parent=0
    _
  %s14 = ssub.s32 1, %s12
  %s15 = scalar_select 0, %s14, %s12
  $region1: #{gating_encoder_forward.1} parent=0
    #allocation6 [shape = 'u8[8192]{0}', space=vmem, size = 0x2000, scoped, tag = 'output window, operand 0, single buffered']
    #allocation7 [shape = 's32[1]{0}', space=sflag, size = 0x4, scoped, tag = 'scoped memory for gating_encoder_forward.1']
    #allocation8 [shape = 'u8[8192]{0}', space=vmem, size = 0x2000, scoped, tag = 'output window, operand 1, single buffered']
    #allocation9 [shape = 's32[1]{0}', space=sflag, size = 0x4, scoped, tag = 'scoped memory for gating_encoder_forward.1']
    %16 = vsyncpa [#allocation7], 0
    %17 = vsyncpa [#allocation9], 0
    // Predicated region
    $region2: #{gating_encoder_forward.1} parent=1 // pred_check
      _
    $region3: #{gating_encoder_forward.1} parent=1 // pred_check_branch
      %19 = sbr.rel (0) target = $region5
    $region4: #{gating_encoder_forward.1} parent=1 // pred_region
      _
    $region5: #{gating_encoder_forward.1} parent=1 // pred_fallthru
      _
    // Predicated region
    $region6: #{gating_encoder_forward.1} parent=1 // pred_check
      _
    $region7: #{gating_encoder_forward.1} parent=1 // pred_check_branch
      %21 = sbr.rel (0) target = $region9
    $region8: #{gating_encoder_forward.1} parent=1 // pred_region
      _
    $region9: #{gating_encoder_forward.1} parent=1 // pred_fallthru
      _
    // Predicated region
    $region10: #{gating_encoder_forward.1} parent=1 // pred_check
      _
    $region11: #{gating_encoder_forward.1} parent=1 // pred_check_branch
      %23 = sbr.rel (0) target = $region13
    $region12: #{gating_encoder_forward.1} parent=1 // pred_region
      _
    $region13: #{gating_encoder_forward.1} parent=1 // pred_fallthru
      _
    // Predicated region
    $region14: #{gating_encoder_forward.1} parent=1 // pred_check
      _
    $region15: #{gating_encoder_forward.1} parent=1 // pred_check_branch
      %25 = sbr.rel (0) target = $region17
    $region16: #{gating_encoder_forward.1} parent=1 // pred_region
      _
    $region17: #{gating_encoder_forward.1} parent=1 // pred_fallthru
      _
    // Predicated region
    $region18: #{gating_encoder_forward.1} parent=1 // pred_check
      _
    $region19: #{gating_encoder_forward.1} parent=1 // pred_check_branch
      %27 = sbr.rel (0) target = $region21
    $region20: #{gating_encoder_forward.1} parent=1 // pred_region
      _
    $region21: #{gating_encoder_forward.1} parent=1 // pred_fallthru
      _
    // Predicated region
    $region22: #{gating_encoder_forward.1} parent=1 // pred_check
      _
    $region23: #{gating_encoder_forward.1} parent=1 // pred_check_branch
      %29 = sbr.rel (0) target = $region25
    $region24: #{gating_encoder_forward.1} parent=1 // pred_region
      _
    $region25: #{gating_encoder_forward.1} parent=1 // pred_fallthru
      _
    // Predicated region
    $region26: #{gating_encoder_forward.1} parent=1 // pred_check
      _
    $region27: #{gating_encoder_forward.1} parent=1 // pred_check_branch
      %31 = sbr.rel (0) target = $region29
    $region28: #{gating_encoder_forward.1} parent=1 // pred_region
      _
    $region29: #{gating_encoder_forward.1} parent=1 // pred_fallthru
      _
    // Predicated region
    $region30: #{gating_encoder_forward.1} parent=1 // pred_check
      _
    $region31: #{gating_encoder_forward.1} parent=1 // pred_check_branch
      %33 = sbr.rel (0) target = $region33
    $region32: #{gating_encoder_forward.1} parent=1 // pred_region
      _
    $region33: #{gating_encoder_forward.1} parent=1 // pred_fallthru
      _
    // Predicated region
    $region34: #{gating_encoder_forward.1} parent=1 // pred_check
      _
    $region35: #{gating_encoder_forward.1} parent=1 // pred_check_branch
      %35 = sbr.rel (0) target = $region37
    $region36: #{gating_encoder_forward.1} parent=1 // pred_region
      _
    $region37: #{gating_encoder_forward.1} parent=1 // pred_fallthru
      _
    %p37 = scmp.eq.s32.totalorder 0, 0
    // Predicated region
    $region38: #{gating_encoder_forward.1} parent=1 // pred_check
      %p38 = pneg %p37
    $region39: #{gating_encoder_forward.1} parent=1 // pred_check_branch
      %40 = sbr.rel (%p38) target = $region41
    $region40: #{gating_encoder_forward.1} parent=1 // pred_region
      %vm41 = vcmask 254976
      %42 = vst.msk [vmem:[#allocation2] sm:$0x3] %vm41, 0.0
    $region41: #{gating_encoder_forward.1} parent=1 // pred_fallthru
      _
    %v43 = vld [vmem:[%s0] sm:$0xf]
    %v44 = vld [vmem:[%s0 + $0x4] sm:$0xf]
    %v45 = vld [vmem:[%s1] sm:$0xf]
    %v46 = vld [vmem:[%s1 + $0x4] sm:$0xf]
    %v47 = vld [vmem:[%s1 + $0x8] sm:$0xf]
    %v48 = vld [vmem:[%s1 + $0xc] sm:$0xf]
    %v49 = vld [vmem:[%s1 + $0x10] sm:$0xf]
    %v50 = vld [vmem:[%s1 + $0x14] sm:$0x3]
    %v51 = vld [vmem:[%s2] sm:$0x1]
    %v53 = vlaneseq
    %v54 = vshrl.u32 %v53, 7
    %v55 = vsub.s32 0, %v54
    %v56 = vrot.slane %v51, %v55
    %v60 = vunpack.c.l.b16 %v43
    %v61 = vunpack.c.l.b16 %v44
    %v62 = vpack.c.b16 %v61, %v60
    %v69 = vunpack.c.l.b16 %v45
    %v70 = vunpack.c.l.b16 %v46
    %v71 = vunpack.c.l.b16 %v47
    %v72 = vunpack.c.l.b16 %v48
    %v73 = vunpack.c.l.b16 %v49
    %v74 = vunpack.c.l.b16 %v50
    %v75 = vpack.c.b16 %v70, %v69
    %v76 = vpack.c.b16 %v72, %v71
    %v77 = vpack.c.b16 %v74, %v73
    %vm80 = vcmask 359424
    %v82 = vsel %vm80, %v62, 0
    %vm84 = vcmask 1045504
    %v86 = vsel %vm84, %v77, 0
    %88 = vmatprep.subr.bf16.mxu0 0
    %89 = vmatpush1.bf16.msra.mxu0 %v75
    %90 = vmatprep.subr.bf16.mxu0 0
    %91 = vmatpush1.bf16.msra.mxu0 %v76
    %92 = vmatprep.subr.bf16.mxu0 0
    %93 = vmatpush1.bf16.msra.mxu0 %v86
    %94 = vmatprep.subr.bf16.mxu0 0
    %95 = vmatpush1.bf16.msra.mxu0 0
    %96 = vmatprep.subr.bf16.mxu0 0
    %97 = vmatpush1.bf16.msra.mxu0 0
    %98 = vmatprep.subr.bf16.mxu0 0
    %99 = vmatpush1.bf16.msra.mxu0 0
    %100 = vmatprep.subr.bf16.mxu0 0
    %101 = vmatpush1.bf16.msra.mxu0 0
    %102 = vmatprep.subr.bf16.mxu0 0
    %103 = vmatpush1.bf16.msra.mxu0 0
    %104 = vmatprep.subr.bf16.mxu0 0
    %105 = vmatpush1.bf16.msra.mxu0 0
    %106 = vmatprep.subr.bf16.mxu0 0
    %107 = vmatpush1.bf16.msra.mxu0 0
    %108 = vmatprep.subr.bf16.mxu0 0
    %109 = vmatpush1.bf16.msra.mxu0 0
    %110 = vmatprep.subr.bf16.mxu0 0
    %111 = vmatpush1.bf16.msra.mxu0 0
    %112 = vmatprep.subr.bf16.mxu0 0
    %113 = vmatpush1.bf16.msra.mxu0 0
    %114 = vmatprep.subr.bf16.mxu0 0
    %115 = vmatpush1.bf16.msra.mxu0 0
    %116 = vmatprep.subr.bf16.mxu0 0
    %117 = vmatpush1.bf16.msra.mxu0 0
    %118 = vmatprep.subr.bf16.mxu0 0
    %119 = vmatpush1.bf16.msra.mxu0 0
    %120 = vmatprep.mubr.bf16.mxu0 0
    %121 = vmatmul.mubr.bf16.gmra.mrb[0].mxu0 %v82
    %v122 = vpop.f32.mrb[0].mxu0
    %v123 = vadd.f32 %v56, %v122
    %v124 = vpop.f32.mrb[0].mxu0
    %v125 = vpop.f32.mrb[0].mxu0
    %v126 = vadd.f32 %v56, %v125
    %v127 = vpop.f32.mrb[0].mxu0
    %128 = vdwg.mxu0
    %vm129 = vcmask 261120
    %130 = vst.msk [vmem:[#allocation3] sm:$0xff] %vm129, %v123
    %131 = vst.msk [vmem:[#allocation3 + $0x8] sm:$0xff] %vm129, %v126
    %134 = vrot.lane.b32.xlu0 %v123, 96
    %v135 = vpop.permute.xlu0 %134
    %136 = vrot.lane.b32.xlu0 %v126, 96
    %v137 = vpop.permute.xlu0 %136
    %140 = vst.msk [vmem:[#allocation4] sm:$0xff] %vm129, %v135
    %141 = vst.msk [vmem:[#allocation4 + $0x8] sm:$0xff] %vm129, %v137
    %142 = vrot.lane.b32.xlu0 %v123, 64
    %v143 = vpop.permute.xlu0 %142
    %144 = vrot.lane.b32.xlu0 %v126, 64
    %v145 = vpop.permute.xlu0 %144
    %148 = vst.msk [vmem:[#allocation5] sm:$0xff] %vm129, %v143
    %149 = vst.msk [vmem:[#allocation5 + $0x8] sm:$0xff] %vm129, %v145
    %v150 = vld [vmem:[%s3] sm:$0xff]
    %v151 = vld [vmem:[%s3 + $0x8] sm:$0xff]
    %v152 = vld [vmem:[%s3 + $0x10] sm:$0xff]
    %v153 = vld [vmem:[%s3 + $0x18] sm:$0xff]
    %v154 = vld [vmem:[%s4] sm:$0xff]
    %v155 = vld [vmem:[%s4 + $0x8] sm:$0xff]
    %v156 = vld [vmem:[%s4 + $0x10] sm:$0xff]
    %v157 = vld [vmem:[%s4 + $0x18] sm:$0xff]
    %v158 = vld [vmem:[%s5] sm:$0xff]
    %v159 = vld [vmem:[%s5 + $0x8] sm:$0xff]
    %v160 = vld [vmem:[%s5 + $0x10] sm:$0xff]
    %v161 = vld [vmem:[%s5 + $0x18] sm:$0xff]
    %v162 = vld [vmem:[%s6] sm:$0x1]
    %v163 = vld [vmem:[#allocation2] sm:$0x3]
    %v165 = vsel %vm129, %v163, 0
    %167 = vmatprep.subr.mxu0 0.0
    %168 = vmatpush1.msra.mxu0 %v150
    %169 = vmatprep.subr.mxu0 0.0
    %170 = vmatpush1.msra.mxu0 %v151
    %171 = vmatprep.subr.mxu0 0.0
    %172 = vmatpush1.msra.mxu0 %v152
    %173 = vmatprep.subr.mxu0 0.0
    %174 = vmatpush1.msra.mxu0 %v153
    %175 = vmatprep.subr.mxu0 0.0
    %176 = vmatpush1.msra.mxu0 0.0
    %177 = vmatprep.subr.mxu0 0.0
    %178 = vmatpush1.msra.mxu0 0.0
    %179 = vmatprep.subr.mxu0 0.0
    %180 = vmatpush1.msra.mxu0 0.0
    %181 = vmatprep.subr.mxu0 0.0
    %182 = vmatpush1.msra.mxu0 0.0
    %183 = vmatprep.subr.mxu0 0.0
    %184 = vmatpush1.msra.mxu0 0.0
    %185 = vmatprep.subr.mxu0 0.0
    %186 = vmatpush1.msra.mxu0 0.0
    %187 = vmatprep.subr.mxu0 0.0
    %188 = vmatpush1.msra.mxu0 0.0
    %189 = vmatprep.subr.mxu0 0.0
    %190 = vmatpush1.msra.mxu0 0.0
    %191 = vmatprep.subr.mxu0 0.0
    %192 = vmatpush1.msra.mxu0 0.0
    %193 = vmatprep.subr.mxu0 0.0
    %194 = vmatpush1.msra.mxu0 0.0
    %195 = vmatprep.subr.mxu0 0.0
    %196 = vmatpush1.msra.mxu0 0.0
    %197 = vmatprep.subr.mxu0 0.0
    %198 = vmatpush1.msra.mxu0 0.0
    %199 = vmatprep.subr.mxu0 0.0
    %200 = vmatpush1.msra.mxu0 0.0
    %201 = vmatprep.subr.mxu0 0.0
    %202 = vmatpush1.msra.mxu0 0.0
    %203 = vmatprep.subr.mxu0 0.0
    %204 = vmatpush1.msra.mxu0 0.0
    %205 = vmatprep.subr.mxu0 0.0
    %206 = vmatpush1.msra.mxu0 0.0
    %207 = vmatprep.subr.mxu0 0.0
    %208 = vmatpush1.msra.mxu0 0.0
    %209 = vmatprep.subr.mxu0 0.0
    %210 = vmatpush1.msra.mxu0 0.0
    %211 = vmatprep.subr.mxu0 0.0
    %212 = vmatpush1.msra.mxu0 0.0
    %213 = vmatprep.subr.mxu0 0.0
    %214 = vmatpush1.msra.mxu0 0.0
    %215 = vmatprep.subr.mxu0 0.0
    %216 = vmatpush1.msra.mxu0 0.0
    %217 = vmatprep.subr.mxu0 0.0
    %218 = vmatpush1.msra.mxu0 0.0
    %219 = vmatprep.subr.mxu0 0.0
    %220 = vmatpush1.msra.mxu0 0.0
    %221 = vmatprep.subr.mxu0 0.0
    %222 = vmatpush1.msra.mxu0 0.0
    %223 = vmatprep.subr.mxu0 0.0
    %224 = vmatpush1.msra.mxu0 0.0
    %225 = vmatprep.subr.mxu0 0.0
    %226 = vmatpush1.msra.mxu0 0.0
    %227 = vmatprep.subr.mxu0 0.0
    %228 = vmatpush1.msra.mxu0 0.0
    %229 = vmatprep.subr.mxu0 0.0
    %230 = vmatpush1.msra.mxu0 0.0
    %231 = vmatprep.mubr.f32.mxu0 0.0
    %232 = vmatmul.mubr.f32.gmra.mrb[0].mxu0 %v165
    %v233 = vpop.f32.mrb[0].mxu0
    %v234 = vadd.f32 0.0, %v233
    %v235 = vpop.f32.mrb[0].mxu0
    %236 = vdwg.mxu0
    %237 = vmatprep.subr.mxu0 0.0
    %238 = vmatpush1.msra.mxu0 %v154
    %239 = vmatprep.subr.mxu0 0.0
    %240 = vmatpush1.msra.mxu0 %v155
    %241 = vmatprep.subr.mxu0 0.0
    %242 = vmatpush1.msra.mxu0 %v156
    %243 = vmatprep.subr.mxu0 0.0
    %244 = vmatpush1.msra.mxu0 %v157
    %245 = vmatprep.subr.mxu0 0.0
    %246 = vmatpush1.msra.mxu0 0.0
    %247 = vmatprep.subr.mxu0 0.0
    %248 = vmatpush1.msra.mxu0 0.0
    %249 = vmatprep.subr.mxu0 0.0
    %250 = vmatpush1.msra.mxu0 0.0
    %251 = vmatprep.subr.mxu0 0.0
    %252 = vmatpush1.msra.mxu0 0.0
    %253 = vmatprep.subr.mxu0 0.0
    %254 = vmatpush1.msra.mxu0 0.0
    %255 = vmatprep.subr.mxu0 0.0
    %256 = vmatpush1.msra.mxu0 0.0
    %257 = vmatprep.subr.mxu0 0.0
    %258 = vmatpush1.msra.mxu0 0.0
    %259 = vmatprep.subr.mxu0 0.0
    %260 = vmatpush1.msra.mxu0 0.0
    %261 = vmatprep.subr.mxu0 0.0
    %262 = vmatpush1.msra.mxu0 0.0
    %263 = vmatprep.subr.mxu0 0.0
    %264 = vmatpush1.msra.mxu0 0.0
    %265 = vmatprep.subr.mxu0 0.0
    %266 = vmatpush1.msra.mxu0 0.0
    %267 = vmatprep.subr.mxu0 0.0
    %268 = vmatpush1.msra.mxu0 0.0
    %269 = vmatprep.subr.mxu0 0.0
    %270 = vmatpush1.msra.mxu0 0.0
    %271 = vmatprep.subr.mxu0 0.0
    %272 = vmatpush1.msra.mxu0 0.0
    %273 = vmatprep.subr.mxu0 0.0
    %274 = vmatpush1.msra.mxu0 0.0
    %275 = vmatprep.subr.mxu0 0.0
    %276 = vmatpush1.msra.mxu0 0.0
    %277 = vmatprep.subr.mxu0 0.0
    %278 = vmatpush1.msra.mxu0 0.0
    %279 = vmatprep.subr.mxu0 0.0
    %280 = vmatpush1.msra.mxu0 0.0
    %281 = vmatprep.subr.mxu0 0.0
    %282 = vmatpush1.msra.mxu0 0.0
    %283 = vmatprep.subr.mxu0 0.0
    %284 = vmatpush1.msra.mxu0 0.0
    %285 = vmatprep.subr.mxu0 0.0
    %286 = vmatpush1.msra.mxu0 0.0
    %287 = vmatprep.subr.mxu0 0.0
    %288 = vmatpush1.msra.mxu0 0.0
    %289 = vmatprep.subr.mxu0 0.0
    %290 = vmatpush1.msra.mxu0 0.0
    %291 = vmatprep.subr.mxu0 0.0
    %292 = vmatpush1.msra.mxu0 0.0
    %293 = vmatprep.subr.mxu0 0.0
    %294 = vmatpush1.msra.mxu0 0.0
    %295 = vmatprep.subr.mxu0 0.0
    %296 = vmatpush1.msra.mxu0 0.0
    %297 = vmatprep.subr.mxu0 0.0
    %298 = vmatpush1.msra.mxu0 0.0
    %299 = vmatprep.subr.mxu0 0.0
    %300 = vmatpush1.msra.mxu0 0.0
    %301 = vmatprep.mubr.f32.mxu0 0.0
    %302 = vmatmul.mubr.f32.gmra.mrb[0].mxu0 %v165
    %v303 = vpop.f32.mrb[0].mxu0
    %v304 = vadd.f32 0.0, %v303
    %v305 = vpop.f32.mrb[0].mxu0
    %306 = vdwg.mxu0
    %v307 = vld [vmem:[#allocation3] sm:$0x3]
    %v308 = vadd.f32 %v307, %v234
    %v309 = vxor.u32 %v308, 2147483648
    %v310 = vmul.f32 %v309, 1.442695
    %v311 = vpow.pop %v310
    %v312 = vadd.f32 %v311, 1.0
    %v313 = vrcp.pop %v312
    %v314 = vmul.f32 1.0, %v313
    %v315 = vld [vmem:[#allocation4] sm:$0x3]
    %v316 = vadd.f32 %v315, %v304
    %v317 = vxor.u32 %v316, 2147483648
    %v318 = vmul.f32 %v317, 1.442695
    %v319 = vpow.pop %v318
    %v320 = vadd.f32 %v319, 1.0
    %v321 = vrcp.pop %v320
    %v322 = vmul.f32 1.0, %v321
    %v323 = vld [vmem:[#allocation5] sm:$0x3]
    %v325 = vlaneseq
    %v326 = vshrl.u32 %v325, 7
    %v327 = vsub.s32 0, %v326
    %v328 = vrot.slane %v162, %v327
    %330 = vmatprep.subr.mxu0 0.0
    %331 = vmatpush1.msra.mxu0 %v158
    %332 = vmatprep.subr.mxu0 0.0
    %333 = vmatpush1.msra.mxu0 %v159
    %334 = vmatprep.subr.mxu0 0.0
    %335 = vmatpush1.msra.mxu0 %v160
    %336 = vmatprep.subr.mxu0 0.0
    %337 = vmatpush1.msra.mxu0 %v161
    %338 = vmatprep.subr.mxu0 0.0
    %339 = vmatpush1.msra.mxu0 0.0
    %340 = vmatprep.subr.mxu0 0.0
    %341 = vmatpush1.msra.mxu0 0.0
    %342 = vmatprep.subr.mxu0 0.0
    %343 = vmatpush1.msra.mxu0 0.0
    %344 = vmatprep.subr.mxu0 0.0
    %345 = vmatpush1.msra.mxu0 0.0
    %346 = vmatprep.subr.mxu0 0.0
    %347 = vmatpush1.msra.mxu0 0.0
    %348 = vmatprep.subr.mxu0 0.0
    %349 = vmatpush1.msra.mxu0 0.0
    %350 = vmatprep.subr.mxu0 0.0
    %351 = vmatpush1.msra.mxu0 0.0
    %352 = vmatprep.subr.mxu0 0.0
    %353 = vmatpush1.msra.mxu0 0.0
    %354 = vmatprep.subr.mxu0 0.0
    %355 = vmatpush1.msra.mxu0 0.0
    %356 = vmatprep.subr.mxu0 0.0
    %357 = vmatpush1.msra.mxu0 0.0
    %358 = vmatprep.subr.mxu0 0.0
    %359 = vmatpush1.msra.mxu0 0.0
    %360 = vmatprep.subr.mxu0 0.0
    %361 = vmatpush1.msra.mxu0 0.0
    %362 = vmatprep.subr.mxu0 0.0
    %363 = vmatpush1.msra.mxu0 0.0
    %364 = vmatprep.subr.mxu0 0.0
    %365 = vmatpush1.msra.mxu0 0.0
    %366 = vmatprep.subr.mxu0 0.0
    %367 = vmatpush1.msra.mxu0 0.0
    %368 = vmatprep.subr.mxu0 0.0
    %369 = vmatpush1.msra.mxu0 0.0
    %370 = vmatprep.subr.mxu0 0.0
    %371 = vmatpush1.msra.mxu0 0.0
    %372 = vmatprep.subr.mxu0 0.0
    %373 = vmatpush1.msra.mxu0 0.0
    %374 = vmatprep.subr.mxu0 0.0
    %375 = vmatpush1.msra.mxu0 0.0
    %376 = vmatprep.subr.mxu0 0.0
    %377 = vmatpush1.msra.mxu0 0.0
    %378 = vmatprep.subr.mxu0 0.0
    %379 = vmatpush1.msra.mxu0 0.0
    %380 = vmatprep.subr.mxu0 0.0
    %381 = vmatpush1.msra.mxu0 0.0
    %382 = vmatprep.subr.mxu0 0.0
    %383 = vmatpush1.msra.mxu0 0.0
    %384 = vmatprep.subr.mxu0 0.0
    %385 = vmatpush1.msra.mxu0 0.0
    %386 = vmatprep.subr.mxu0 0.0
    %387 = vmatpush1.msra.mxu0 0.0
    %388 = vmatprep.subr.mxu0 0.0
    %389 = vmatpush1.msra.mxu0 0.0
    %390 = vmatprep.subr.mxu0 0.0
    %391 = vmatpush1.msra.mxu0 0.0
    %392 = vmatprep.subr.mxu0 0.0
    %393 = vmatpush1.msra.mxu0 0.0
    %394 = vmatprep.mubr.f32.mxu0 0.0
    %395 = vmatmul.mubr.f32.gmra.mrb[0].mxu0 %v165
    %v396 = vpop.f32.mrb[0].mxu0
    %v397 = vadd.f32 %v328, %v396
    %v398 = vpop.f32.mrb[0].mxu0
    %399 = vdwg.mxu0
    %v400 = vmul.f32 %v314, %v397
    %v401 = vadd.f32 %v323, %v400
    %v402 = vtanh.pop %v401
    %v403 = vsub.f32 1.0, %v322
    %v404 = vmul.f32 %v403, %v402
    %v405 = vmul.f32 %v322, %v163
    %v406 = vadd.f32 %v404, %v405
    %vm407 = vcmask 254976
    %408 = vst.msk [vmem:[#allocation8] sm:$0x3] %vm407, %v406
    %v410 = vsel %vm129, %v406, 0
    %412 = vmatprep.subr.mxu0 0.0
    %413 = vmatpush1.msra.mxu0 %v150
    %414 = vmatprep.subr.mxu0 0.0
    %415 = vmatpush1.msra.mxu0 %v151
    %416 = vmatprep.subr.mxu0 0.0
    %417 = vmatpush1.msra.mxu0 %v152
    %418 = vmatprep.subr.mxu0 0.0
    %419 = vmatpush1.msra.mxu0 %v153
    %420 = vmatprep.subr.mxu0 0.0
    %421 = vmatpush1.msra.mxu0 0.0
    %422 = vmatprep.subr.mxu0 0.0
    %423 = vmatpush1.msra.mxu0 0.0
    %424 = vmatprep.subr.mxu0 0.0
    %425 = vmatpush1.msra.mxu0 0.0
    %426 = vmatprep.subr.mxu0 0.0
    %427 = vmatpush1.msra.mxu0 0.0
    %428 = vmatprep.subr.mxu0 0.0
    %429 = vmatpush1.msra.mxu0 0.0
    %430 = vmatprep.subr.mxu0 0.0
    %431 = vmatpush1.msra.mxu0 0.0
    %432 = vmatprep.subr.mxu0 0.0
    %433 = vmatpush1.msra.mxu0 0.0
    %434 = vmatprep.subr.mxu0 0.0
    %435 = vmatpush1.msra.mxu0 0.0
    %436 = vmatprep.subr.mxu0 0.0
    %437 = vmatpush1.msra.mxu0 0.0
    %438 = vmatprep.subr.mxu0 0.0
    %439 = vmatpush1.msra.mxu0 0.0
    %440 = vmatprep.subr.mxu0 0.0
    %441 = vmatpush1.msra.mxu0 0.0
    %442 = vmatprep.subr.mxu0 0.0
    %443 = vmatpush1.msra.mxu0 0.0
    %444 = vmatprep.subr.mxu0 0.0
    %445 = vmatpush1.msra.mxu0 0.0
    %446 = vmatprep.subr.mxu0 0.0
    %447 = vmatpush1.msra.mxu0 0.0
    %448 = vmatprep.subr.mxu0 0.0
    %449 = vmatpush1.msra.mxu0 0.0
    %450 = vmatprep.subr.mxu0 0.0
    %451 = vmatpush1.msra.mxu0 0.0
    %452 = vmatprep.subr.mxu0 0.0
    %453 = vmatpush1.msra.mxu0 0.0
    %454 = vmatprep.subr.mxu0 0.0
    %455 = vmatpush1.msra.mxu0 0.0
    %456 = vmatprep.subr.mxu0 0.0
    %457 = vmatpush1.msra.mxu0 0.0
    %458 = vmatprep.subr.mxu0 0.0
    %459 = vmatpush1.msra.mxu0 0.0
    %460 = vmatprep.subr.mxu0 0.0
    %461 = vmatpush1.msra.mxu0 0.0
    %462 = vmatprep.subr.mxu0 0.0
    %463 = vmatpush1.msra.mxu0 0.0
    %464 = vmatprep.subr.mxu0 0.0
    %465 = vmatpush1.msra.mxu0 0.0
    %466 = vmatprep.subr.mxu0 0.0
    %467 = vmatpush1.msra.mxu0 0.0
    %468 = vmatprep.subr.mxu0 0.0
    %469 = vmatpush1.msra.mxu0 0.0
    %470 = vmatprep.subr.mxu0 0.0
    %471 = vmatpush1.msra.mxu0 0.0
    %472 = vmatprep.subr.mxu0 0.0
    %473 = vmatpush1.msra.mxu0 0.0
    %474 = vmatprep.subr.mxu0 0.0
    %475 = vmatpush1.msra.mxu0 0.0
    %476 = vmatprep.mubr.f32.mxu0 0.0
    %477 = vmatmul.mubr.f32.gmra.mrb[0].mxu0 %v410
    %v478 = vpop.f32.mrb[0].mxu0
    %v479 = vadd.f32 0.0, %v478
    %v480 = vpop.f32.mrb[0].mxu0
    %481 = vdwg.mxu0
    %482 = vmatprep.subr.mxu0 0.0
    %483 = vmatpush1.msra.mxu0 %v154
    %484 = vmatprep.subr.mxu0 0.0
    %485 = vmatpush1.msra.mxu0 %v155
    %486 = vmatprep.subr.mxu0 0.0
    %487 = vmatpush1.msra.mxu0 %v156
    %488 = vmatprep.subr.mxu0 0.0
    %489 = vmatpush1.msra.mxu0 %v157
    %490 = vmatprep.subr.mxu0 0.0
    %491 = vmatpush1.msra.mxu0 0.0
    %492 = vmatprep.subr.mxu0 0.0
    %493 = vmatpush1.msra.mxu0 0.0
    %494 = vmatprep.subr.mxu0 0.0
    %495 = vmatpush1.msra.mxu0 0.0
    %496 = vmatprep.subr.mxu0 0.0
    %497 = vmatpush1.msra.mxu0 0.0
    %498 = vmatprep.subr.mxu0 0.0
    %499 = vmatpush1.msra.mxu0 0.0
    %500 = vmatprep.subr.mxu0 0.0
    %501 = vmatpush1.msra.mxu0 0.0
    %502 = vmatprep.subr.mxu0 0.0
    %503 = vmatpush1.msra.mxu0 0.0
    %504 = vmatprep.subr.mxu0 0.0
    %505 = vmatpush1.msra.mxu0 0.0
    %506 = vmatprep.subr.mxu0 0.0
    %507 = vmatpush1.msra.mxu0 0.0
    %508 = vmatprep.subr.mxu0 0.0
    %509 = vmatpush1.msra.mxu0 0.0
    %510 = vmatprep.subr.mxu0 0.0
    %511 = vmatpush1.msra.mxu0 0.0
    %512 = vmatprep.subr.mxu0 0.0
    %513 = vmatpush1.msra.mxu0 0.0
    %514 = vmatprep.subr.mxu0 0.0
    %515 = vmatpush1.msra.mxu0 0.0
    %516 = vmatprep.subr.mxu0 0.0
    %517 = vmatpush1.msra.mxu0 0.0
    %518 = vmatprep.subr.mxu0 0.0
    %519 = vmatpush1.msra.mxu0 0.0
    %520 = vmatprep.subr.mxu0 0.0
    %521 = vmatpush1.msra.mxu0 0.0
    %522 = vmatprep.subr.mxu0 0.0
    %523 = vmatpush1.msra.mxu0 0.0
    %524 = vmatprep.subr.mxu0 0.0
    %525 = vmatpush1.msra.mxu0 0.0
    %526 = vmatprep.subr.mxu0 0.0
    %527 = vmatpush1.msra.mxu0 0.0
    %528 = vmatprep.subr.mxu0 0.0
    %529 = vmatpush1.msra.mxu0 0.0
    %530 = vmatprep.subr.mxu0 0.0
    %531 = vmatpush1.msra.mxu0 0.0
    %532 = vmatprep.subr.mxu0 0.0
    %533 = vmatpush1.msra.mxu0 0.0
    %534 = vmatprep.subr.mxu0 0.0
    %535 = vmatpush1.msra.mxu0 0.0
    %536 = vmatprep.subr.mxu0 0.0
    %537 = vmatpush1.msra.mxu0 0.0
    %538 = vmatprep.subr.mxu0 0.0
    %539 = vmatpush1.msra.mxu0 0.0
    %540 = vmatprep.subr.mxu0 0.0
    %541 = vmatpush1.msra.mxu0 0.0
    %542 = vmatprep.subr.mxu0 0.0
    %543 = vmatpush1.msra.mxu0 0.0
    %544 = vmatprep.subr.mxu0 0.0
    %545 = vmatpush1.msra.mxu0 0.0
    %546 = vmatprep.mubr.f32.mxu0 0.0
    %547 = vmatmul.mubr.f32.gmra.mrb[0].mxu0 %v410
    %v548 = vpop.f32.mrb[0].mxu0
    %v549 = vadd.f32 0.0, %v548
    %v550 = vpop.f32.mrb[0].mxu0
    %551 = vdwg.mxu0
    %v552 = vld [vmem:[#allocation3 + $0x2] sm:$0x3]
    %v553 = vadd.f32 %v552, %v479
    %v554 = vxor.u32 %v553, 2147483648
    %v555 = vmul.f32 %v554, 1.442695
    %v556 = vpow.pop %v555
    %v557 = vadd.f32 %v556, 1.0
    %v558 = vrcp.pop %v557
    %v559 = vmul.f32 1.0, %v558
    %v560 = vld [vmem:[#allocation4 + $0x2] sm:$0x3]
    %v561 = vadd.f32 %v560, %v549
    %v562 = vxor.u32 %v561, 2147483648
    %v563 = vmul.f32 %v562, 1.442695
    %v564 = vpow.pop %v563
    %v565 = vadd.f32 %v564, 1.0
    %v566 = vrcp.pop %v565
    %v567 = vmul.f32 1.0, %v566
    %v568 = vld [vmem:[#allocation5 + $0x2] sm:$0x3]
    %569 = vmatprep.subr.mxu0 0.0
    %570 = vmatpush1.msra.mxu0 %v158
    %571 = vmatprep.subr.mxu0 0.0
    %572 = vmatpush1.msra.mxu0 %v159
    %573 = vmatprep.subr.mxu0 0.0
    %574 = vmatpush1.msra.mxu0 %v160
    %575 = vmatprep.subr.mxu0 0.0
    %576 = vmatpush1.msra.mxu0 %v161
    %577 = vmatprep.subr.mxu0 0.0
    %578 = vmatpush1.msra.mxu0 0.0
    %579 = vmatprep.subr.mxu0 0.0
    %580 = vmatpush1.msra.mxu0 0.0
    %581 = vmatprep.subr.mxu0 0.0
    %582 = vmatpush1.msra.mxu0 0.0
    %583 = vmatprep.subr.mxu0 0.0
    %584 = vmatpush1.msra.mxu0 0.0
    %585 = vmatprep.subr.mxu0 0.0
    %586 = vmatpush1.msra.mxu0 0.0
    %587 = vmatprep.subr.mxu0 0.0
    %588 = vmatpush1.msra.mxu0 0.0
    %589 = vmatprep.subr.mxu0 0.0
    %590 = vmatpush1.msra.mxu0 0.0
    %591 = vmatprep.subr.mxu0 0.0
    %592 = vmatpush1.msra.mxu0 0.0
    %593 = vmatprep.subr.mxu0 0.0
    %594 = vmatpush1.msra.mxu0 0.0
    %595 = vmatprep.subr.mxu0 0.0
    %596 = vmatpush1.msra.mxu0 0.0
    %597 = vmatprep.subr.mxu0 0.0
    %598 = vmatpush1.msra.mxu0 0.0
    %599 = vmatprep.subr.mxu0 0.0
    %600 = vmatpush1.msra.mxu0 0.0
    %601 = vmatprep.subr.mxu0 0.0
    %602 = vmatpush1.msra.mxu0 0.0
    %603 = vmatprep.subr.mxu0 0.0
    %604 = vmatpush1.msra.mxu0 0.0
    %605 = vmatprep.subr.mxu0 0.0
    %606 = vmatpush1.msra.mxu0 0.0
    %607 = vmatprep.subr.mxu0 0.0
    %608 = vmatpush1.msra.mxu0 0.0
    %609 = vmatprep.subr.mxu0 0.0
    %610 = vmatpush1.msra.mxu0 0.0
    %611 = vmatprep.subr.mxu0 0.0
    %612 = vmatpush1.msra.mxu0 0.0
    %613 = vmatprep.subr.mxu0 0.0
    %614 = vmatpush1.msra.mxu0 0.0
    %615 = vmatprep.subr.mxu0 0.0
    %616 = vmatpush1.msra.mxu0 0.0
    %617 = vmatprep.subr.mxu0 0.0
    %618 = vmatpush1.msra.mxu0 0.0
    %619 = vmatprep.subr.mxu0 0.0
    %620 = vmatpush1.msra.mxu0 0.0
    %621 = vmatprep.subr.mxu0 0.0
    %622 = vmatpush1.msra.mxu0 0.0
    %623 = vmatprep.subr.mxu0 0.0
    %624 = vmatpush1.msra.mxu0 0.0
    %625 = vmatprep.subr.mxu0 0.0
    %626 = vmatpush1.msra.mxu0 0.0
    %627 = vmatprep.subr.mxu0 0.0
    %628 = vmatpush1.msra.mxu0 0.0
    %629 = vmatprep.subr.mxu0 0.0
    %630 = vmatpush1.msra.mxu0 0.0
    %631 = vmatprep.subr.mxu0 0.0
    %632 = vmatpush1.msra.mxu0 0.0
    %633 = vmatprep.mubr.f32.mxu0 0.0
    %634 = vmatmul.mubr.f32.gmra.mrb[0].mxu0 %v410
    %v635 = vpop.f32.mrb[0].mxu0
    %v636 = vadd.f32 %v328, %v635
    %v637 = vpop.f32.mrb[0].mxu0
    %638 = vdwg.mxu0
    %v639 = vmul.f32 %v559, %v636
    %v640 = vadd.f32 %v568, %v639
    %v641 = vtanh.pop %v640
    %v642 = vsub.f32 1.0, %v567
    %v643 = vmul.f32 %v642, %v641
    %v644 = vmul.f32 %v567, %v406
    %v645 = vadd.f32 %v643, %v644
    %646 = vst.msk [vmem:[#allocation8 + $0x2] sm:$0x3] %vm407, %v645
    %v648 = vsel %vm129, %v645, 0
    %650 = vmatprep.subr.mxu0 0.0
    %651 = vmatpush1.msra.mxu0 %v150
    %652 = vmatprep.subr.mxu0 0.0
    %653 = vmatpush1.msra.mxu0 %v151
    %654 = vmatprep.subr.mxu0 0.0
    %655 = vmatpush1.msra.mxu0 %v152
    %656 = vmatprep.subr.mxu0 0.0
    %657 = vmatpush1.msra.mxu0 %v153
    %658 = vmatprep.subr.mxu0 0.0
    %659 = vmatpush1.msra.mxu0 0.0
    %660 = vmatprep.subr.mxu0 0.0
    %661 = vmatpush1.msra.mxu0 0.0
    %662 = vmatprep.subr.mxu0 0.0
    %663 = vmatpush1.msra.mxu0 0.0
    %664 = vmatprep.subr.mxu0 0.0
    %665 = vmatpush1.msra.mxu0 0.0
    %666 = vmatprep.subr.mxu0 0.0
    %667 = vmatpush1.msra.mxu0 0.0
    %668 = vmatprep.subr.mxu0 0.0
    %669 = vmatpush1.msra.mxu0 0.0
    %670 = vmatprep.subr.mxu0 0.0
    %671 = vmatpush1.msra.mxu0 0.0
    %672 = vmatprep.subr.mxu0 0.0
    %673 = vmatpush1.msra.mxu0 0.0
    %674 = vmatprep.subr.mxu0 0.0
    %675 = vmatpush1.msra.mxu0 0.0
    %676 = vmatprep.subr.mxu0 0.0
    %677 = vmatpush1.msra.mxu0 0.0
    %678 = vmatprep.subr.mxu0 0.0
    %679 = vmatpush1.msra.mxu0 0.0
    %680 = vmatprep.subr.mxu0 0.0
    %681 = vmatpush1.msra.mxu0 0.0
    %682 = vmatprep.subr.mxu0 0.0
    %683 = vmatpush1.msra.mxu0 0.0
    %684 = vmatprep.subr.mxu0 0.0
    %685 = vmatpush1.msra.mxu0 0.0
    %686 = vmatprep.subr.mxu0 0.0
    %687 = vmatpush1.msra.mxu0 0.0
    %688 = vmatprep.subr.mxu0 0.0
    %689 = vmatpush1.msra.mxu0 0.0
    %690 = vmatprep.subr.mxu0 0.0
    %691 = vmatpush1.msra.mxu0 0.0
    %692 = vmatprep.subr.mxu0 0.0
    %693 = vmatpush1.msra.mxu0 0.0
    %694 = vmatprep.subr.mxu0 0.0
    %695 = vmatpush1.msra.mxu0 0.0
    %696 = vmatprep.subr.mxu0 0.0
    %697 = vmatpush1.msra.mxu0 0.0
    %698 = vmatprep.subr.mxu0 0.0
    %699 = vmatpush1.msra.mxu0 0.0
    %700 = vmatprep.subr.mxu0 0.0
    %701 = vmatpush1.msra.mxu0 0.0
    %702 = vmatprep.subr.mxu0 0.0
    %703 = vmatpush1.msra.mxu0 0.0
    %704 = vmatprep.subr.mxu0 0.0
    %705 = vmatpush1.msra.mxu0 0.0
    %706 = vmatprep.subr.mxu0 0.0
    %707 = vmatpush1.msra.mxu0 0.0
    %708 = vmatprep.subr.mxu0 0.0
    %709 = vmatpush1.msra.mxu0 0.0
    %710 = vmatprep.subr.mxu0 0.0
    %711 = vmatpush1.msra.mxu0 0.0
    %712 = vmatprep.subr.mxu0 0.0
    %713 = vmatpush1.msra.mxu0 0.0
    %714 = vmatprep.mubr.f32.mxu0 0.0
    %715 = vmatmul.mubr.f32.gmra.mrb[0].mxu0 %v648
    %v716 = vpop.f32.mrb[0].mxu0
    %v717 = vadd.f32 0.0, %v716
    %v718 = vpop.f32.mrb[0].mxu0
    %719 = vdwg.mxu0
    %720 = vmatprep.subr.mxu0 0.0
    %721 = vmatpush1.msra.mxu0 %v154
    %722 = vmatprep.subr.mxu0 0.0
    %723 = vmatpush1.msra.mxu0 %v155
    %724 = vmatprep.subr.mxu0 0.0
    %725 = vmatpush1.msra.mxu0 %v156
    %726 = vmatprep.subr.mxu0 0.0
    %727 = vmatpush1.msra.mxu0 %v157
    %728 = vmatprep.subr.mxu0 0.0
    %729 = vmatpush1.msra.mxu0 0.0
    %730 = vmatprep.subr.mxu0 0.0
    %731 = vmatpush1.msra.mxu0 0.0
    %732 = vmatprep.subr.mxu0 0.0
    %733 = vmatpush1.msra.mxu0 0.0
    %734 = vmatprep.subr.mxu0 0.0
    %735 = vmatpush1.msra.mxu0 0.0
    %736 = vmatprep.subr.mxu0 0.0
    %737 = vmatpush1.msra.mxu0 0.0
    %738 = vmatprep.subr.mxu0 0.0
    %739 = vmatpush1.msra.mxu0 0.0
    %740 = vmatprep.subr.mxu0 0.0
    %741 = vmatpush1.msra.mxu0 0.0
    %742 = vmatprep.subr.mxu0 0.0
    %743 = vmatpush1.msra.mxu0 0.0
    %744 = vmatprep.subr.mxu0 0.0
    %745 = vmatpush1.msra.mxu0 0.0
    %746 = vmatprep.subr.mxu0 0.0
    %747 = vmatpush1.msra.mxu0 0.0
    %748 = vmatprep.subr.mxu0 0.0
    %749 = vmatpush1.msra.mxu0 0.0
    %750 = vmatprep.subr.mxu0 0.0
    %751 = vmatpush1.msra.mxu0 0.0
    %752 = vmatprep.subr.mxu0 0.0
    %753 = vmatpush1.msra.mxu0 0.0
    %754 = vmatprep.subr.mxu0 0.0
    %755 = vmatpush1.msra.mxu0 0.0
    %756 = vmatprep.subr.mxu0 0.0
    %757 = vmatpush1.msra.mxu0 0.0
    %758 = vmatprep.subr.mxu0 0.0
    %759 = vmatpush1.msra.mxu0 0.0
    %760 = vmatprep.subr.mxu0 0.0
    %761 = vmatpush1.msra.mxu0 0.0
    %762 = vmatprep.subr.mxu0 0.0
    %763 = vmatpush1.msra.mxu0 0.0
    %764 = vmatprep.subr.mxu0 0.0
    %765 = vmatpush1.msra.mxu0 0.0
    %766 = vmatprep.subr.mxu0 0.0
    %767 = vmatpush1.msra.mxu0 0.0
    %768 = vmatprep.subr.mxu0 0.0
    %769 = vmatpush1.msra.mxu0 0.0
    %770 = vmatprep.subr.mxu0 0.0
    %771 = vmatpush1.msra.mxu0 0.0
    %772 = vmatprep.subr.mxu0 0.0
    %773 = vmatpush1.msra.mxu0 0.0
    %774 = vmatprep.subr.mxu0 0.0
    %775 = vmatpush1.msra.mxu0 0.0
    %776 = vmatprep.subr.mxu0 0.0
    %777 = vmatpush1.msra.mxu0 0.0
    %778 = vmatprep.subr.mxu0 0.0
    %779 = vmatpush1.msra.mxu0 0.0
    %780 = vmatprep.subr.mxu0 0.0
    %781 = vmatpush1.msra.mxu0 0.0
    %782 = vmatprep.subr.mxu0 0.0
    %783 = vmatpush1.msra.mxu0 0.0
    %784 = vmatprep.mubr.f32.mxu0 0.0
    %785 = vmatmul.mubr.f32.gmra.mrb[0].mxu0 %v648
    %v786 = vpop.f32.mrb[0].mxu0
    %v787 = vadd.f32 0.0, %v786
    %v788 = vpop.f32.mrb[0].mxu0
    %789 = vdwg.mxu0
    %v790 = vld [vmem:[#allocation3 + $0x4] sm:$0x3]
    %v791 = vadd.f32 %v790, %v717
    %v792 = vxor.u32 %v791, 2147483648
    %v793 = vmul.f32 %v792, 1.442695
    %v794 = vpow.pop %v793
    %v795 = vadd.f32 %v794, 1.0
    %v796 = vrcp.pop %v795
    %v797 = vmul.f32 1.0, %v796
    %v798 = vld [vmem:[#allocation4 + $0x4] sm:$0x3]
    %v799 = vadd.f32 %v798, %v787
    %v800 = vxor.u32 %v799, 2147483648
    %v801 = vmul.f32 %v800, 1.442695
    %v802 = vpow.pop %v801
    %v803 = vadd.f32 %v802, 1.0
    %v804 = vrcp.pop %v803
    %v805 = vmul.f32 1.0, %v804
    %v806 = vld [vmem:[#allocation5 + $0x4] sm:$0x3]
    %807 = vmatprep.subr.mxu0 0.0
    %808 = vmatpush1.msra.mxu0 %v158
    %809 = vmatprep.subr.mxu0 0.0
    %810 = vmatpush1.msra.mxu0 %v159
    %811 = vmatprep.subr.mxu0 0.0
    %812 = vmatpush1.msra.mxu0 %v160
    %813 = vmatprep.subr.mxu0 0.0
    %814 = vmatpush1.msra.mxu0 %v161
    %815 = vmatprep.subr.mxu0 0.0
    %816 = vmatpush1.msra.mxu0 0.0
    %817 = vmatprep.subr.mxu0 0.0
    %818 = vmatpush1.msra.mxu0 0.0
    %819 = vmatprep.subr.mxu0 0.0
    %820 = vmatpush1.msra.mxu0 0.0
    %821 = vmatprep.subr.mxu0 0.0
    %822 = vmatpush1.msra.mxu0 0.0
    %823 = vmatprep.subr.mxu0 0.0
    %824 = vmatpush1.msra.mxu0 0.0
    %825 = vmatprep.subr.mxu0 0.0
    %826 = vmatpush1.msra.mxu0 0.0
    %827 = vmatprep.subr.mxu0 0.0
    %828 = vmatpush1.msra.mxu0 0.0
    %829 = vmatprep.subr.mxu0 0.0
    %830 = vmatpush1.msra.mxu0 0.0
    %831 = vmatprep.subr.mxu0 0.0
    %832 = vmatpush1.msra.mxu0 0.0
    %833 = vmatprep.subr.mxu0 0.0
    %834 = vmatpush1.msra.mxu0 0.0
    %835 = vmatprep.subr.mxu0 0.0
    %836 = vmatpush1.msra.mxu0 0.0
    %837 = vmatprep.subr.mxu0 0.0
    %838 = vmatpush1.msra.mxu0 0.0
    %839 = vmatprep.subr.mxu0 0.0
    %840 = vmatpush1.msra.mxu0 0.0
    %841 = vmatprep.subr.mxu0 0.0
    %842 = vmatpush1.msra.mxu0 0.0
    %843 = vmatprep.subr.mxu0 0.0
    %844 = vmatpush1.msra.mxu0 0.0
    %845 = vmatprep.subr.mxu0 0.0
    %846 = vmatpush1.msra.mxu0 0.0
    %847 = vmatprep.subr.mxu0 0.0
    %848 = vmatpush1.msra.mxu0 0.0
    %849 = vmatprep.subr.mxu0 0.0
    %850 = vmatpush1.msra.mxu0 0.0
    %851 = vmatprep.subr.mxu0 0.0
    %852 = vmatpush1.msra.mxu0 0.0
    %853 = vmatprep.subr.mxu0 0.0
    %854 = vmatpush1.msra.mxu0 0.0
    %855 = vmatprep.subr.mxu0 0.0
    %856 = vmatpush1.msra.mxu0 0.0
    %857 = vmatprep.subr.mxu0 0.0
    %858 = vmatpush1.msra.mxu0 0.0
    %859 = vmatprep.subr.mxu0 0.0
    %860 = vmatpush1.msra.mxu0 0.0
    %861 = vmatprep.subr.mxu0 0.0
    %862 = vmatpush1.msra.mxu0 0.0
    %863 = vmatprep.subr.mxu0 0.0
    %864 = vmatpush1.msra.mxu0 0.0
    %865 = vmatprep.subr.mxu0 0.0
    %866 = vmatpush1.msra.mxu0 0.0
    %867 = vmatprep.subr.mxu0 0.0
    %868 = vmatpush1.msra.mxu0 0.0
    %869 = vmatprep.subr.mxu0 0.0
    %870 = vmatpush1.msra.mxu0 0.0
    %871 = vmatprep.mubr.f32.mxu0 0.0
    %872 = vmatmul.mubr.f32.gmra.mrb[0].mxu0 %v648
    %v873 = vpop.f32.mrb[0].mxu0
    %v874 = vadd.f32 %v328, %v873
    %v875 = vpop.f32.mrb[0].mxu0
    %876 = vdwg.mxu0
    %v877 = vmul.f32 %v797, %v874
    %v878 = vadd.f32 %v806, %v877
    %v879 = vtanh.pop %v878
    %v880 = vsub.f32 1.0, %v805
    %v881 = vmul.f32 %v880, %v879
    %v882 = vmul.f32 %v805, %v645
    %v883 = vadd.f32 %v881, %v882
    %884 = vst.msk [vmem:[#allocation8 + $0x4] sm:$0x3] %vm407, %v883
    %v886 = vsel %vm129, %v883, 0
    %888 = vmatprep.subr.mxu0 0.0
    %889 = vmatpush1.msra.mxu0 %v150
    %890 = vmatprep.subr.mxu0 0.0
    %891 = vmatpush1.msra.mxu0 %v151
    %892 = vmatprep.subr.mxu0 0.0
    %893 = vmatpush1.msra.mxu0 %v152
    %894 = vmatprep.subr.mxu0 0.0
    %895 = vmatpush1.msra.mxu0 %v153
    %896 = vmatprep.subr.mxu0 0.0
    %897 = vmatpush1.msra.mxu0 0.0
    %898 = vmatprep.subr.mxu0 0.0
    %899 = vmatpush1.msra.mxu0 0.0
    %900 = vmatprep.subr.mxu0 0.0
    %901 = vmatpush1.msra.mxu0 0.0
    %902 = vmatprep.subr.mxu0 0.0
    %903 = vmatpush1.msra.mxu0 0.0
    %904 = vmatprep.subr.mxu0 0.0
    %905 = vmatpush1.msra.mxu0 0.0
    %906 = vmatprep.subr.mxu0 0.0
    %907 = vmatpush1.msra.mxu0 0.0
    %908 = vmatprep.subr.mxu0 0.0
    %909 = vmatpush1.msra.mxu0 0.0
    %910 = vmatprep.subr.mxu0 0.0
    %911 = vmatpush1.msra.mxu0 0.0
    %912 = vmatprep.subr.mxu0 0.0
    %913 = vmatpush1.msra.mxu0 0.0
    %914 = vmatprep.subr.mxu0 0.0
    %915 = vmatpush1.msra.mxu0 0.0
    %916 = vmatprep.subr.mxu0 0.0
    %917 = vmatpush1.msra.mxu0 0.0
    %918 = vmatprep.subr.mxu0 0.0
    %919 = vmatpush1.msra.mxu0 0.0
    %920 = vmatprep.subr.mxu0 0.0
    %921 = vmatpush1.msra.mxu0 0.0
    %922 = vmatprep.subr.mxu0 0.0
    %923 = vmatpush1.msra.mxu0 0.0
    %924 = vmatprep.subr.mxu0 0.0
    %925 = vmatpush1.msra.mxu0 0.0
    %926 = vmatprep.subr.mxu0 0.0
    %927 = vmatpush1.msra.mxu0 0.0
    %928 = vmatprep.subr.mxu0 0.0
    %929 = vmatpush1.msra.mxu0 0.0
    %930 = vmatprep.subr.mxu0 0.0
    %931 = vmatpush1.msra.mxu0 0.0
    %932 = vmatprep.subr.mxu0 0.0
    %933 = vmatpush1.msra.mxu0 0.0
    %934 = vmatprep.subr.mxu0 0.0
    %935 = vmatpush1.msra.mxu0 0.0
    %936 = vmatprep.subr.mxu0 0.0
    %937 = vmatpush1.msra.mxu0 0.0
    %938 = vmatprep.subr.mxu0 0.0
    %939 = vmatpush1.msra.mxu0 0.0
    %940 = vmatprep.subr.mxu0 0.0
    %941 = vmatpush1.msra.mxu0 0.0
    %942 = vmatprep.subr.mxu0 0.0
    %943 = vmatpush1.msra.mxu0 0.0
    %944 = vmatprep.subr.mxu0 0.0
    %945 = vmatpush1.msra.mxu0 0.0
    %946 = vmatprep.subr.mxu0 0.0
    %947 = vmatpush1.msra.mxu0 0.0
    %948 = vmatprep.subr.mxu0 0.0
    %949 = vmatpush1.msra.mxu0 0.0
    %950 = vmatprep.subr.mxu0 0.0
    %951 = vmatpush1.msra.mxu0 0.0
    %952 = vmatprep.mubr.f32.mxu0 0.0
    %953 = vmatmul.mubr.f32.gmra.mrb[0].mxu0 %v886
    %v954 = vpop.f32.mrb[0].mxu0
    %v955 = vadd.f32 0.0, %v954
    %v956 = vpop.f32.mrb[0].mxu0
    %957 = vdwg.mxu0
    %958 = vmatprep.subr.mxu0 0.0
    %959 = vmatpush1.msra.mxu0 %v154
    %960 = vmatprep.subr.mxu0 0.0
    %961 = vmatpush1.msra.mxu0 %v155
    %962 = vmatprep.subr.mxu0 0.0
    %963 = vmatpush1.msra.mxu0 %v156
    %964 = vmatprep.subr.mxu0 0.0
    %965 = vmatpush1.msra.mxu0 %v157
    %966 = vmatprep.subr.mxu0 0.0
    %967 = vmatpush1.msra.mxu0 0.0
    %968 = vmatprep.subr.mxu0 0.0
    %969 = vmatpush1.msra.mxu0 0.0
    %970 = vmatprep.subr.mxu0 0.0
    %971 = vmatpush1.msra.mxu0 0.0
    %972 = vmatprep.subr.mxu0 0.0
    %973 = vmatpush1.msra.mxu0 0.0
    %974 = vmatprep.subr.mxu0 0.0
    %975 = vmatpush1.msra.mxu0 0.0
    %976 = vmatprep.subr.mxu0 0.0
    %977 = vmatpush1.msra.mxu0 0.0
    %978 = vmatprep.subr.mxu0 0.0
    %979 = vmatpush1.msra.mxu0 0.0
    %980 = vmatprep.subr.mxu0 0.0
    %981 = vmatpush1.msra.mxu0 0.0
    %982 = vmatprep.subr.mxu0 0.0
    %983 = vmatpush1.msra.mxu0 0.0
    %984 = vmatprep.subr.mxu0 0.0
    %985 = vmatpush1.msra.mxu0 0.0
    %986 = vmatprep.subr.mxu0 0.0
    %987 = vmatpush1.msra.mxu0 0.0
    %988 = vmatprep.subr.mxu0 0.0
    %989 = vmatpush1.msra.mxu0 0.0
    %990 = vmatprep.subr.mxu0 0.0
    %991 = vmatpush1.msra.mxu0 0.0
    %992 = vmatprep.subr.mxu0 0.0
    %993 = vmatpush1.msra.mxu0 0.0
    %994 = vmatprep.subr.mxu0 0.0
    %995 = vmatpush1.msra.mxu0 0.0
    %996 = vmatprep.subr.mxu0 0.0
    %997 = vmatpush1.msra.mxu0 0.0
    %998 = vmatprep.subr.mxu0 0.0
    %999 = vmatpush1.msra.mxu0 0.0
    %1000 = vmatprep.subr.mxu0 0.0
    %1001 = vmatpush1.msra.mxu0 0.0
    %1002 = vmatprep.subr.mxu0 0.0
    %1003 = vmatpush1.msra.mxu0 0.0
    %1004 = vmatprep.subr.mxu0 0.0
    %1005 = vmatpush1.msra.mxu0 0.0
    %1006 = vmatprep.subr.mxu0 0.0
    %1007 = vmatpush1.msra.mxu0 0.0
    %1008 = vmatprep.subr.mxu0 0.0
    %1009 = vmatpush1.msra.mxu0 0.0
    %1010 = vmatprep.subr.mxu0 0.0
    %1011 = vmatpush1.msra.mxu0 0.0
    %1012 = vmatprep.subr.mxu0 0.0
    %1013 = vmatpush1.msra.mxu0 0.0
    %1014 = vmatprep.subr.mxu0 0.0
    %1015 = vmatpush1.msra.mxu0 0.0
    %1016 = vmatprep.subr.mxu0 0.0
    %1017 = vmatpush1.msra.mxu0 0.0
    %1018 = vmatprep.subr.mxu0 0.0
    %1019 = vmatpush1.msra.mxu0 0.0
    %1020 = vmatprep.subr.mxu0 0.0
    %1021 = vmatpush1.msra.mxu0 0.0
    %1022 = vmatprep.mubr.f32.mxu0 0.0
    %1023 = vmatmul.mubr.f32.gmra.mrb[0].mxu0 %v886
    %v1024 = vpop.f32.mrb[0].mxu0
    %v1025 = vadd.f32 0.0, %v1024
    %v1026 = vpop.f32.mrb[0].mxu0
    %1027 = vdwg.mxu0
    %v1028 = vld [vmem:[#allocation3 + $0x6] sm:$0x3]
    %v1029 = vadd.f32 %v1028, %v955
    %v1030 = vxor.u32 %v1029, 2147483648
    %v1031 = vmul.f32 %v1030, 1.442695
    %v1032 = vpow.pop %v1031
    %v1033 = vadd.f32 %v1032, 1.0
    %v1034 = vrcp.pop %v1033
    %v1035 = vmul.f32 1.0, %v1034
    %v1036 = vld [vmem:[#allocation4 + $0x6] sm:$0x3]
    %v1037 = vadd.f32 %v1036, %v1025
    %v1038 = vxor.u32 %v1037, 2147483648
    %v1039 = vmul.f32 %v1038, 1.442695
    %v1040 = vpow.pop %v1039
    %v1041 = vadd.f32 %v1040, 1.0
    %v1042 = vrcp.pop %v1041
    %v1043 = vmul.f32 1.0, %v1042
    %v1044 = vld [vmem:[#allocation5 + $0x6] sm:$0x3]
    %1045 = vmatprep.subr.mxu0 0.0
    %1046 = vmatpush1.msra.mxu0 %v158
    %1047 = vmatprep.subr.mxu0 0.0
    %1048 = vmatpush1.msra.mxu0 %v159
    %1049 = vmatprep.subr.mxu0 0.0
    %1050 = vmatpush1.msra.mxu0 %v160
    %1051 = vmatprep.subr.mxu0 0.0
    %1052 = vmatpush1.msra.mxu0 %v161
    %1053 = vmatprep.subr.mxu0 0.0
    %1054 = vmatpush1.msra.mxu0 0.0
    %1055 = vmatprep.subr.mxu0 0.0
    %1056 = vmatpush1.msra.mxu0 0.0
    %1057 = vmatprep.subr.mxu0 0.0
    %1058 = vmatpush1.msra.mxu0 0.0
    %1059 = vmatprep.subr.mxu0 0.0
    %1060 = vmatpush1.msra.mxu0 0.0
    %1061 = vmatprep.subr.mxu0 0.0
    %1062 = vmatpush1.msra.mxu0 0.0
    %1063 = vmatprep.subr.mxu0 0.0
    %1064 = vmatpush1.msra.mxu0 0.0
    %1065 = vmatprep.subr.mxu0 0.0
    %1066 = vmatpush1.msra.mxu0 0.0
    %1067 = vmatprep.subr.mxu0 0.0
    %1068 = vmatpush1.msra.mxu0 0.0
    %1069 = vmatprep.subr.mxu0 0.0
    %1070 = vmatpush1.msra.mxu0 0.0
    %1071 = vmatprep.subr.mxu0 0.0
    %1072 = vmatpush1.msra.mxu0 0.0
    %1073 = vmatprep.subr.mxu0 0.0
    %1074 = vmatpush1.msra.mxu0 0.0
    %1075 = vmatprep.subr.mxu0 0.0
    %1076 = vmatpush1.msra.mxu0 0.0
    %1077 = vmatprep.subr.mxu0 0.0
    %1078 = vmatpush1.msra.mxu0 0.0
    %1079 = vmatprep.subr.mxu0 0.0
    %1080 = vmatpush1.msra.mxu0 0.0
    %1081 = vmatprep.subr.mxu0 0.0
    %1082 = vmatpush1.msra.mxu0 0.0
    %1083 = vmatprep.subr.mxu0 0.0
    %1084 = vmatpush1.msra.mxu0 0.0
    %1085 = vmatprep.subr.mxu0 0.0
    %1086 = vmatpush1.msra.mxu0 0.0
    %1087 = vmatprep.subr.mxu0 0.0
    %1088 = vmatpush1.msra.mxu0 0.0
    %1089 = vmatprep.subr.mxu0 0.0
    %1090 = vmatpush1.msra.mxu0 0.0
    %1091 = vmatprep.subr.mxu0 0.0
    %1092 = vmatpush1.msra.mxu0 0.0
    %1093 = vmatprep.subr.mxu0 0.0
    %1094 = vmatpush1.msra.mxu0 0.0
    %1095 = vmatprep.subr.mxu0 0.0
    %1096 = vmatpush1.msra.mxu0 0.0
    %1097 = vmatprep.subr.mxu0 0.0
    %1098 = vmatpush1.msra.mxu0 0.0
    %1099 = vmatprep.subr.mxu0 0.0
    %1100 = vmatpush1.msra.mxu0 0.0
    %1101 = vmatprep.subr.mxu0 0.0
    %1102 = vmatpush1.msra.mxu0 0.0
    %1103 = vmatprep.subr.mxu0 0.0
    %1104 = vmatpush1.msra.mxu0 0.0
    %1105 = vmatprep.subr.mxu0 0.0
    %1106 = vmatpush1.msra.mxu0 0.0
    %1107 = vmatprep.subr.mxu0 0.0
    %1108 = vmatpush1.msra.mxu0 0.0
    %1109 = vmatprep.mubr.f32.mxu0 0.0
    %1110 = vmatmul.mubr.f32.gmra.mrb[0].mxu0 %v886
    %v1111 = vpop.f32.mrb[0].mxu0
    %v1112 = vadd.f32 %v328, %v1111
    %v1113 = vpop.f32.mrb[0].mxu0
    %1114 = vdwg.mxu0
    %v1115 = vmul.f32 %v1035, %v1112
    %v1116 = vadd.f32 %v1044, %v1115
    %v1117 = vtanh.pop %v1116
    %v1118 = vsub.f32 1.0, %v1043
    %v1119 = vmul.f32 %v1118, %v1117
    %v1120 = vmul.f32 %v1043, %v883
    %v1121 = vadd.f32 %v1119, %v1120
    %1122 = vst.msk [vmem:[#allocation8 + $0x6] sm:$0x3] %vm407, %v1121
    %v1124 = vsel %vm129, %v1121, 0
    %1126 = vmatprep.subr.mxu0 0.0
    %1127 = vmatpush1.msra.mxu0 %v150
    %1128 = vmatprep.subr.mxu0 0.0
    %1129 = vmatpush1.msra.mxu0 %v151
    %1130 = vmatprep.subr.mxu0 0.0
    %1131 = vmatpush1.msra.mxu0 %v152
    %1132 = vmatprep.subr.mxu0 0.0
    %1133 = vmatpush1.msra.mxu0 %v153
    %1134 = vmatprep.subr.mxu0 0.0
    %1135 = vmatpush1.msra.mxu0 0.0
    %1136 = vmatprep.subr.mxu0 0.0
    %1137 = vmatpush1.msra.mxu0 0.0
    %1138 = vmatprep.subr.mxu0 0.0
    %1139 = vmatpush1.msra.mxu0 0.0
    %1140 = vmatprep.subr.mxu0 0.0
    %1141 = vmatpush1.msra.mxu0 0.0
    %1142 = vmatprep.subr.mxu0 0.0
    %1143 = vmatpush1.msra.mxu0 0.0
    %1144 = vmatprep.subr.mxu0 0.0
    %1145 = vmatpush1.msra.mxu0 0.0
    %1146 = vmatprep.subr.mxu0 0.0
    %1147 = vmatpush1.msra.mxu0 0.0
    %1148 = vmatprep.subr.mxu0 0.0
    %1149 = vmatpush1.msra.mxu0 0.0
    %1150 = vmatprep.subr.mxu0 0.0
    %1151 = vmatpush1.msra.mxu0 0.0
    %1152 = vmatprep.subr.mxu0 0.0
    %1153 = vmatpush1.msra.mxu0 0.0
    %1154 = vmatprep.subr.mxu0 0.0
    %1155 = vmatpush1.msra.mxu0 0.0
    %1156 = vmatprep.subr.mxu0 0.0
    %1157 = vmatpush1.msra.mxu0 0.0
    %1158 = vmatprep.subr.mxu0 0.0
    %1159 = vmatpush1.msra.mxu0 0.0
    %1160 = vmatprep.subr.mxu0 0.0
    %1161 = vmatpush1.msra.mxu0 0.0
    %1162 = vmatprep.subr.mxu0 0.0
    %1163 = vmatpush1.msra.mxu0 0.0
    %1164 = vmatprep.subr.mxu0 0.0
    %1165 = vmatpush1.msra.mxu0 0.0
    %1166 = vmatprep.subr.mxu0 0.0
    %1167 = vmatpush1.msra.mxu0 0.0
    %1168 = vmatprep.subr.mxu0 0.0
    %1169 = vmatpush1.msra.mxu0 0.0
    %1170 = vmatprep.subr.mxu0 0.0
    %1171 = vmatpush1.msra.mxu0 0.0
    %1172 = vmatprep.subr.mxu0 0.0
    %1173 = vmatpush1.msra.mxu0 0.0
    %1174 = vmatprep.subr.mxu0 0.0
    %1175 = vmatpush1.msra.mxu0 0.0
    %1176 = vmatprep.subr.mxu0 0.0
    %1177 = vmatpush1.msra.mxu0 0.0
    %1178 = vmatprep.subr.mxu0 0.0
    %1179 = vmatpush1.msra.mxu0 0.0
    %1180 = vmatprep.subr.mxu0 0.0
    %1181 = vmatpush1.msra.mxu0 0.0
    %1182 = vmatprep.subr.mxu0 0.0
    %1183 = vmatpush1.msra.mxu0 0.0
    %1184 = vmatprep.subr.mxu0 0.0
    %1185 = vmatpush1.msra.mxu0 0.0
    %1186 = vmatprep.subr.mxu0 0.0
    %1187 = vmatpush1.msra.mxu0 0.0
    %1188 = vmatprep.subr.mxu0 0.0
    %1189 = vmatpush1.msra.mxu0 0.0
    %1190 = vmatprep.mubr.f32.mxu0 0.0
    %1191 = vmatmul.mubr.f32.gmra.mrb[0].mxu0 %v1124
    %v1192 = vpop.f32.mrb[0].mxu0
    %v1193 = vadd.f32 0.0, %v1192
    %v1194 = vpop.f32.mrb[0].mxu0
    %1195 = vdwg.mxu0
    %1196 = vmatprep.subr.mxu0 0.0
    %1197 = vmatpush1.msra.mxu0 %v154
    %1198 = vmatprep.subr.mxu0 0.0
    %1199 = vmatpush1.msra.mxu0 %v155
    %1200 = vmatprep.subr.mxu0 0.0
    %1201 = vmatpush1.msra.mxu0 %v156
    %1202 = vmatprep.subr.mxu0 0.0
    %1203 = vmatpush1.msra.mxu0 %v157
    %1204 = vmatprep.subr.mxu0 0.0
    %1205 = vmatpush1.msra.mxu0 0.0
    %1206 = vmatprep.subr.mxu0 0.0
    %1207 = vmatpush1.msra.mxu0 0.0
    %1208 = vmatprep.subr.mxu0 0.0
    %1209 = vmatpush1.msra.mxu0 0.0
    %1210 = vmatprep.subr.mxu0 0.0
    %1211 = vmatpush1.msra.mxu0 0.0
    %1212 = vmatprep.subr.mxu0 0.0
    %1213 = vmatpush1.msra.mxu0 0.0
    %1214 = vmatprep.subr.mxu0 0.0
    %1215 = vmatpush1.msra.mxu0 0.0
    %1216 = vmatprep.subr.mxu0 0.0
    %1217 = vmatpush1.msra.mxu0 0.0
    %1218 = vmatprep.subr.mxu0 0.0
    %1219 = vmatpush1.msra.mxu0 0.0
    %1220 = vmatprep.subr.mxu0 0.0
    %1221 = vmatpush1.msra.mxu0 0.0
    %1222 = vmatprep.subr.mxu0 0.0
    %1223 = vmatpush1.msra.mxu0 0.0
    %1224 = vmatprep.subr.mxu0 0.0
    %1225 = vmatpush1.msra.mxu0 0.0
    %1226 = vmatprep.subr.mxu0 0.0
    %1227 = vmatpush1.msra.mxu0 0.0
    %1228 = vmatprep.subr.mxu0 0.0
    %1229 = vmatpush1.msra.mxu0 0.0
    %1230 = vmatprep.subr.mxu0 0.0
    %1231 = vmatpush1.msra.mxu0 0.0
    %1232 = vmatprep.subr.mxu0 0.0
    %1233 = vmatpush1.msra.mxu0 0.0
    %1234 = vmatprep.subr.mxu0 0.0
    %1235 = vmatpush1.msra.mxu0 0.0
    %1236 = vmatprep.subr.mxu0 0.0
    %1237 = vmatpush1.msra.mxu0 0.0
    %1238 = vmatprep.subr.mxu0 0.0
    %1239 = vmatpush1.msra.mxu0 0.0
    %1240 = vmatprep.subr.mxu0 0.0
    %1241 = vmatpush1.msra.mxu0 0.0
    %1242 = vmatprep.subr.mxu0 0.0
    %1243 = vmatpush1.msra.mxu0 0.0
    %1244 = vmatprep.subr.mxu0 0.0
    %1245 = vmatpush1.msra.mxu0 0.0
    %1246 = vmatprep.subr.mxu0 0.0
    %1247 = vmatpush1.msra.mxu0 0.0
    %1248 = vmatprep.subr.mxu0 0.0
    %1249 = vmatpush1.msra.mxu0 0.0
    %1250 = vmatprep.subr.mxu0 0.0
    %1251 = vmatpush1.msra.mxu0 0.0
    %1252 = vmatprep.subr.mxu0 0.0
    %1253 = vmatpush1.msra.mxu0 0.0
    %1254 = vmatprep.subr.mxu0 0.0
    %1255 = vmatpush1.msra.mxu0 0.0
    %1256 = vmatprep.subr.mxu0 0.0
    %1257 = vmatpush1.msra.mxu0 0.0
    %1258 = vmatprep.subr.mxu0 0.0
    %1259 = vmatpush1.msra.mxu0 0.0
    %1260 = vmatprep.mubr.f32.mxu0 0.0
    %1261 = vmatmul.mubr.f32.gmra.mrb[0].mxu0 %v1124
    %v1262 = vpop.f32.mrb[0].mxu0
    %v1263 = vadd.f32 0.0, %v1262
    %v1264 = vpop.f32.mrb[0].mxu0
    %1265 = vdwg.mxu0
    %v1266 = vld [vmem:[#allocation3 + $0x8] sm:$0x3]
    %v1267 = vadd.f32 %v1266, %v1193
    %v1268 = vxor.u32 %v1267, 2147483648
    %v1269 = vmul.f32 %v1268, 1.442695
    %v1270 = vpow.pop %v1269
    %v1271 = vadd.f32 %v1270, 1.0
    %v1272 = vrcp.pop %v1271
    %v1273 = vmul.f32 1.0, %v1272
    %v1274 = vld [vmem:[#allocation4 + $0x8] sm:$0x3]
    %v1275 = vadd.f32 %v1274, %v1263
    %v1276 = vxor.u32 %v1275, 2147483648
    %v1277 = vmul.f32 %v1276, 1.442695
    %v1278 = vpow.pop %v1277
    %v1279 = vadd.f32 %v1278, 1.0
    %v1280 = vrcp.pop %v1279
    %v1281 = vmul.f32 1.0, %v1280
    %v1282 = vld [vmem:[#allocation5 + $0x8] sm:$0x3]
    %1283 = vmatprep.subr.mxu0 0.0
    %1284 = vmatpush1.msra.mxu0 %v158
    %1285 = vmatprep.subr.mxu0 0.0
    %1286 = vmatpush1.msra.mxu0 %v159
    %1287 = vmatprep.subr.mxu0 0.0
    %1288 = vmatpush1.msra.mxu0 %v160
    %1289 = vmatprep.subr.mxu0 0.0
    %1290 = vmatpush1.msra.mxu0 %v161
    %1291 = vmatprep.subr.mxu0 0.0
    %1292 = vmatpush1.msra.mxu0 0.0
    %1293 = vmatprep.subr.mxu0 0.0
    %1294 = vmatpush1.msra.mxu0 0.0
    %1295 = vmatprep.subr.mxu0 0.0
    %1296 = vmatpush1.msra.mxu0 0.0
    %1297 = vmatprep.subr.mxu0 0.0
    %1298 = vmatpush1.msra.mxu0 0.0
    %1299 = vmatprep.subr.mxu0 0.0
    %1300 = vmatpush1.msra.mxu0 0.0
    %1301 = vmatprep.subr.mxu0 0.0
    %1302 = vmatpush1.msra.mxu0 0.0
    %1303 = vmatprep.subr.mxu0 0.0
    %1304 = vmatpush1.msra.mxu0 0.0
    %1305 = vmatprep.subr.mxu0 0.0
    %1306 = vmatpush1.msra.mxu0 0.0
    %1307 = vmatprep.subr.mxu0 0.0
    %1308 = vmatpush1.msra.mxu0 0.0
    %1309 = vmatprep.subr.mxu0 0.0
    %1310 = vmatpush1.msra.mxu0 0.0
    %1311 = vmatprep.subr.mxu0 0.0
    %1312 = vmatpush1.msra.mxu0 0.0
    %1313 = vmatprep.subr.mxu0 0.0
    %1314 = vmatpush1.msra.mxu0 0.0
    %1315 = vmatprep.subr.mxu0 0.0
    %1316 = vmatpush1.msra.mxu0 0.0
    %1317 = vmatprep.subr.mxu0 0.0
    %1318 = vmatpush1.msra.mxu0 0.0
    %1319 = vmatprep.subr.mxu0 0.0
    %1320 = vmatpush1.msra.mxu0 0.0
    %1321 = vmatprep.subr.mxu0 0.0
    %1322 = vmatpush1.msra.mxu0 0.0
    %1323 = vmatprep.subr.mxu0 0.0
    %1324 = vmatpush1.msra.mxu0 0.0
    %1325 = vmatprep.subr.mxu0 0.0
    %1326 = vmatpush1.msra.mxu0 0.0
    %1327 = vmatprep.subr.mxu0 0.0
    %1328 = vmatpush1.msra.mxu0 0.0
    %1329 = vmatprep.subr.mxu0 0.0
    %1330 = vmatpush1.msra.mxu0 0.0
    %1331 = vmatprep.subr.mxu0 0.0
    %1332 = vmatpush1.msra.mxu0 0.0
    %1333 = vmatprep.subr.mxu0 0.0
    %1334 = vmatpush1.msra.mxu0 0.0
    %1335 = vmatprep.subr.mxu0 0.0
    %1336 = vmatpush1.msra.mxu0 0.0
    %1337 = vmatprep.subr.mxu0 0.0
    %1338 = vmatpush1.msra.mxu0 0.0
    %1339 = vmatprep.subr.mxu0 0.0
    %1340 = vmatpush1.msra.mxu0 0.0
    %1341 = vmatprep.subr.mxu0 0.0
    %1342 = vmatpush1.msra.mxu0 0.0
    %1343 = vmatprep.subr.mxu0 0.0
    %1344 = vmatpush1.msra.mxu0 0.0
    %1345 = vmatprep.subr.mxu0 0.0
    %1346 = vmatpush1.msra.mxu0 0.0
    %1347 = vmatprep.mubr.f32.mxu0 0.0
    %1348 = vmatmul.mubr.f32.gmra.mrb[0].mxu0 %v1124
    %v1349 = vpop.f32.mrb[0].mxu0
    %v1350 = vadd.f32 %v328, %v1349
    %v1351 = vpop.f32.mrb[0].mxu0
    %1352 = vdwg.mxu0
    %v1353 = vmul.f32 %v1273, %v1350
    %v1354 = vadd.f32 %v1282, %v1353
    %v1355 = vtanh.pop %v1354
    %v1356 = vsub.f32 1.0, %v1281
    %v1357 = vmul.f32 %v1356, %v1355
    %v1358 = vmul.f32 %v1281, %v1121
    %v1359 = vadd.f32 %v1357, %v1358
    %1360 = vst.msk [vmem:[#allocation8 + $0x8] sm:$0x3] %vm407, %v1359
    %v1362 = vsel %vm129, %v1359, 0
    %1364 = vmatprep.subr.mxu0 0.0
    %1365 = vmatpush1.msra.mxu0 %v150
    %1366 = vmatprep.subr.mxu0 0.0
    %1367 = vmatpush1.msra.mxu0 %v151
    %1368 = vmatprep.subr.mxu0 0.0
    %1369 = vmatpush1.msra.mxu0 %v152
    %1370 = vmatprep.subr.mxu0 0.0
    %1371 = vmatpush1.msra.mxu0 %v153
    %1372 = vmatprep.subr.mxu0 0.0
    %1373 = vmatpush1.msra.mxu0 0.0
    %1374 = vmatprep.subr.mxu0 0.0
    %1375 = vmatpush1.msra.mxu0 0.0
    %1376 = vmatprep.subr.mxu0 0.0
    %1377 = vmatpush1.msra.mxu0 0.0
    %1378 = vmatprep.subr.mxu0 0.0
    %1379 = vmatpush1.msra.mxu0 0.0
    %1380 = vmatprep.subr.mxu0 0.0
    %1381 = vmatpush1.msra.mxu0 0.0
    %1382 = vmatprep.subr.mxu0 0.0
    %1383 = vmatpush1.msra.mxu0 0.0
    %1384 = vmatprep.subr.mxu0 0.0
    %1385 = vmatpush1.msra.mxu0 0.0
    %1386 = vmatprep.subr.mxu0 0.0
    %1387 = vmatpush1.msra.mxu0 0.0
    %1388 = vmatprep.subr.mxu0 0.0
    %1389 = vmatpush1.msra.mxu0 0.0
    %1390 = vmatprep.subr.mxu0 0.0
    %1391 = vmatpush1.msra.mxu0 0.0
    %1392 = vmatprep.subr.mxu0 0.0
    %1393 = vmatpush1.msra.mxu0 0.0
    %1394 = vmatprep.subr.mxu0 0.0
    %1395 = vmatpush1.msra.mxu0 0.0
    %1396 = vmatprep.subr.mxu0 0.0
    %1397 = vmatpush1.msra.mxu0 0.0
    %1398 = vmatprep.subr.mxu0 0.0
    %1399 = vmatpush1.msra.mxu0 0.0
    %1400 = vmatprep.subr.mxu0 0.0
    %1401 = vmatpush1.msra.mxu0 0.0
    %1402 = vmatprep.subr.mxu0 0.0
    %1403 = vmatpush1.msra.mxu0 0.0
    %1404 = vmatprep.subr.mxu0 0.0
    %1405 = vmatpush1.msra.mxu0 0.0
    %1406 = vmatprep.subr.mxu0 0.0
    %1407 = vmatpush1.msra.mxu0 0.0
    %1408 = vmatprep.subr.mxu0 0.0
    %1409 = vmatpush1.msra.mxu0 0.0
    %1410 = vmatprep.subr.mxu0 0.0
    %1411 = vmatpush1.msra.mxu0 0.0
    %1412 = vmatprep.subr.mxu0 0.0
    %1413 = vmatpush1.msra.mxu0 0.0
    %1414 = vmatprep.subr.mxu0 0.0
    %1415 = vmatpush1.msra.mxu0 0.0
    %1416 = vmatprep.subr.mxu0 0.0
    %1417 = vmatpush1.msra.mxu0 0.0
    %1418 = vmatprep.subr.mxu0 0.0
    %1419 = vmatpush1.msra.mxu0 0.0
    %1420 = vmatprep.subr.mxu0 0.0
    %1421 = vmatpush1.msra.mxu0 0.0
    %1422 = vmatprep.subr.mxu0 0.0
    %1423 = vmatpush1.msra.mxu0 0.0
    %1424 = vmatprep.subr.mxu0 0.0
    %1425 = vmatpush1.msra.mxu0 0.0
    %1426 = vmatprep.subr.mxu0 0.0
    %1427 = vmatpush1.msra.mxu0 0.0
    %1428 = vmatprep.mubr.f32.mxu0 0.0
    %1429 = vmatmul.mubr.f32.gmra.mrb[0].mxu0 %v1362
    %v1430 = vpop.f32.mrb[0].mxu0
    %v1431 = vadd.f32 0.0, %v1430
    %v1432 = vpop.f32.mrb[0].mxu0
    %1433 = vdwg.mxu0
    %1434 = vmatprep.subr.mxu0 0.0
    %1435 = vmatpush1.msra.mxu0 %v154
    %1436 = vmatprep.subr.mxu0 0.0
    %1437 = vmatpush1.msra.mxu0 %v155
    %1438 = vmatprep.subr.mxu0 0.0
    %1439 = vmatpush1.msra.mxu0 %v156
    %1440 = vmatprep.subr.mxu0 0.0
    %1441 = vmatpush1.msra.mxu0 %v157
    %1442 = vmatprep.subr.mxu0 0.0
    %1443 = vmatpush1.msra.mxu0 0.0
    %1444 = vmatprep.subr.mxu0 0.0
    %1445 = vmatpush1.msra.mxu0 0.0
    %1446 = vmatprep.subr.mxu0 0.0
    %1447 = vmatpush1.msra.mxu0 0.0
    %1448 = vmatprep.subr.mxu0 0.0
    %1449 = vmatpush1.msra.mxu0 0.0
    %1450 = vmatprep.subr.mxu0 0.0
    %1451 = vmatpush1.msra.mxu0 0.0
    %1452 = vmatprep.subr.mxu0 0.0
    %1453 = vmatpush1.msra.mxu0 0.0
    %1454 = vmatprep.subr.mxu0 0.0
    %1455 = vmatpush1.msra.mxu0 0.0
    %1456 = vmatprep.subr.mxu0 0.0
    %1457 = vmatpush1.msra.mxu0 0.0
    %1458 = vmatprep.subr.mxu0 0.0
    %1459 = vmatpush1.msra.mxu0 0.0
    %1460 = vmatprep.subr.mxu0 0.0
    %1461 = vmatpush1.msra.mxu0 0.0
    %1462 = vmatprep.subr.mxu0 0.0
    %1463 = vmatpush1.msra.mxu0 0.0
    %1464 = vmatprep.subr.mxu0 0.0
    %1465 = vmatpush1.msra.mxu0 0.0
    %1466 = vmatprep.subr.mxu0 0.0
    %1467 = vmatpush1.msra.mxu0 0.0
    %1468 = vmatprep.subr.mxu0 0.0
    %1469 = vmatpush1.msra.mxu0 0.0
    %1470 = vmatprep.subr.mxu0 0.0
    %1471 = vmatpush1.msra.mxu0 0.0
    %1472 = vmatprep.subr.mxu0 0.0
    %1473 = vmatpush1.msra.mxu0 0.0
    %1474 = vmatprep.subr.mxu0 0.0
    %1475 = vmatpush1.msra.mxu0 0.0
    %1476 = vmatprep.subr.mxu0 0.0
    %1477 = vmatpush1.msra.mxu0 0.0
    %1478 = vmatprep.subr.mxu0 0.0
    %1479 = vmatpush1.msra.mxu0 0.0
    %1480 = vmatprep.subr.mxu0 0.0
    %1481 = vmatpush1.msra.mxu0 0.0
    %1482 = vmatprep.subr.mxu0 0.0
    %1483 = vmatpush1.msra.mxu0 0.0
    %1484 = vmatprep.subr.mxu0 0.0
    %1485 = vmatpush1.msra.mxu0 0.0
    %1486 = vmatprep.subr.mxu0 0.0
    %1487 = vmatpush1.msra.mxu0 0.0
    %1488 = vmatprep.subr.mxu0 0.0
    %1489 = vmatpush1.msra.mxu0 0.0
    %1490 = vmatprep.subr.mxu0 0.0
    %1491 = vmatpush1.msra.mxu0 0.0
    %1492 = vmatprep.subr.mxu0 0.0
    %1493 = vmatpush1.msra.mxu0 0.0
    %1494 = vmatprep.subr.mxu0 0.0
    %1495 = vmatpush1.msra.mxu0 0.0
    %1496 = vmatprep.subr.mxu0 0.0
    %1497 = vmatpush1.msra.mxu0 0.0
    %1498 = vmatprep.mubr.f32.mxu0 0.0
    %1499 = vmatmul.mubr.f32.gmra.mrb[0].mxu0 %v1362
    %v1500 = vpop.f32.mrb[0].mxu0
    %v1501 = vadd.f32 0.0, %v1500
    %v1502 = vpop.f32.mrb[0].mxu0
    %1503 = vdwg.mxu0
    %v1504 = vld [vmem:[#allocation3 + $0xa] sm:$0x3]
    %v1505 = vadd.f32 %v1504, %v1431
    %v1506 = vxor.u32 %v1505, 2147483648
    %v1507 = vmul.f32 %v1506, 1.442695
    %v1508 = vpow.pop %v1507
    %v1509 = vadd.f32 %v1508, 1.0
    %v1510 = vrcp.pop %v1509
    %v1511 = vmul.f32 1.0, %v1510
    %v1512 = vld [vmem:[#allocation4 + $0xa] sm:$0x3]
    %v1513 = vadd.f32 %v1512, %v1501
    %v1514 = vxor.u32 %v1513, 2147483648
    %v1515 = vmul.f32 %v1514, 1.442695
    %v1516 = vpow.pop %v1515
    %v1517 = vadd.f32 %v1516, 1.0
    %v1518 = vrcp.pop %v1517
    %v1519 = vmul.f32 1.0, %v1518
    %v1520 = vld [vmem:[#allocation5 + $0xa] sm:$0x3]
    %1521 = vmatprep.subr.mxu0 0.0
    %1522 = vmatpush1.msra.mxu0 %v158
    %1523 = vmatprep.subr.mxu0 0.0
    %1524 = vmatpush1.msra.mxu0 %v159
    %1525 = vmatprep.subr.mxu0 0.0
    %1526 = vmatpush1.msra.mxu0 %v160
    %1527 = vmatprep.subr.mxu0 0.0
    %1528 = vmatpush1.msra.mxu0 %v161
    %1529 = vmatprep.subr.mxu0 0.0
    %1530 = vmatpush1.msra.mxu0 0.0
    %1531 = vmatprep.subr.mxu0 0.0
    %1532 = vmatpush1.msra.mxu0 0.0
    %1533 = vmatprep.subr.mxu0 0.0
    %1534 = vmatpush1.msra.mxu0 0.0
    %1535 = vmatprep.subr.mxu0 0.0
    %1536 = vmatpush1.msra.mxu0 0.0
    %1537 = vmatprep.subr.mxu0 0.0
    %1538 = vmatpush1.msra.mxu0 0.0
    %1539 = vmatprep.subr.mxu0 0.0
    %1540 = vmatpush1.msra.mxu0 0.0
    %1541 = vmatprep.subr.mxu0 0.0
    %1542 = vmatpush1.msra.mxu0 0.0
    %1543 = vmatprep.subr.mxu0 0.0
    %1544 = vmatpush1.msra.mxu0 0.0
    %1545 = vmatprep.subr.mxu0 0.0
    %1546 = vmatpush1.msra.mxu0 0.0
    %1547 = vmatprep.subr.mxu0 0.0
    %1548 = vmatpush1.msra.mxu0 0.0
    %1549 = vmatprep.subr.mxu0 0.0
    %1550 = vmatpush1.msra.mxu0 0.0
    %1551 = vmatprep.subr.mxu0 0.0
    %1552 = vmatpush1.msra.mxu0 0.0
    %1553 = vmatprep.subr.mxu0 0.0
    %1554 = vmatpush1.msra.mxu0 0.0
    %1555 = vmatprep.subr.mxu0 0.0
    %1556 = vmatpush1.msra.mxu0 0.0
    %1557 = vmatprep.subr.mxu0 0.0
    %1558 = vmatpush1.msra.mxu0 0.0
    %1559 = vmatprep.subr.mxu0 0.0
    %1560 = vmatpush1.msra.mxu0 0.0
    %1561 = vmatprep.subr.mxu0 0.0
    %1562 = vmatpush1.msra.mxu0 0.0
    %1563 = vmatprep.subr.mxu0 0.0
    %1564 = vmatpush1.msra.mxu0 0.0
    %1565 = vmatprep.subr.mxu0 0.0
    %1566 = vmatpush1.msra.mxu0 0.0
    %1567 = vmatprep.subr.mxu0 0.0
    %1568 = vmatpush1.msra.mxu0 0.0
    %1569 = vmatprep.subr.mxu0 0.0
    %1570 = vmatpush1.msra.mxu0 0.0
    %1571 = vmatprep.subr.mxu0 0.0
    %1572 = vmatpush1.msra.mxu0 0.0
    %1573 = vmatprep.subr.mxu0 0.0
    %1574 = vmatpush1.msra.mxu0 0.0
    %1575 = vmatprep.subr.mxu0 0.0
    %1576 = vmatpush1.msra.mxu0 0.0
    %1577 = vmatprep.subr.mxu0 0.0
    %1578 = vmatpush1.msra.mxu0 0.0
    %1579 = vmatprep.subr.mxu0 0.0
    %1580 = vmatpush1.msra.mxu0 0.0
    %1581 = vmatprep.subr.mxu0 0.0
    %1582 = vmatpush1.msra.mxu0 0.0
    %1583 = vmatprep.subr.mxu0 0.0
    %1584 = vmatpush1.msra.mxu0 0.0
    %1585 = vmatprep.mubr.f32.mxu0 0.0
    %1586 = vmatmul.mubr.f32.gmra.mrb[0].mxu0 %v1362
    %v1587 = vpop.f32.mrb[0].mxu0
    %v1588 = vadd.f32 %v328, %v1587
    %v1589 = vpop.f32.mrb[0].mxu0
    %1590 = vdwg.mxu0
    %v1591 = vmul.f32 %v1511, %v1588
    %v1592 = vadd.f32 %v1520, %v1591
    %v1593 = vtanh.pop %v1592
    %v1594 = vsub.f32 1.0, %v1519
    %v1595 = vmul.f32 %v1594, %v1593
    %v1596 = vmul.f32 %v1519, %v1359
    %v1597 = vadd.f32 %v1595, %v1596
    %1598 = vst.msk [vmem:[#allocation8 + $0xa] sm:$0x3] %vm407, %v1597
    %v1600 = vsel %vm129, %v1597, 0
    %1602 = vmatprep.subr.mxu0 0.0
    %1603 = vmatpush1.msra.mxu0 %v150
    %1604 = vmatprep.subr.mxu0 0.0
    %1605 = vmatpush1.msra.mxu0 %v151
    %1606 = vmatprep.subr.mxu0 0.0
    %1607 = vmatpush1.msra.mxu0 %v152
    %1608 = vmatprep.subr.mxu0 0.0
    %1609 = vmatpush1.msra.mxu0 %v153
    %1610 = vmatprep.subr.mxu0 0.0
    %1611 = vmatpush1.msra.mxu0 0.0
    %1612 = vmatprep.subr.mxu0 0.0
    %1613 = vmatpush1.msra.mxu0 0.0
    %1614 = vmatprep.subr.mxu0 0.0
    %1615 = vmatpush1.msra.mxu0 0.0
    %1616 = vmatprep.subr.mxu0 0.0
    %1617 = vmatpush1.msra.mxu0 0.0
    %1618 = vmatprep.subr.mxu0 0.0
    %1619 = vmatpush1.msra.mxu0 0.0
    %1620 = vmatprep.subr.mxu0 0.0
    %1621 = vmatpush1.msra.mxu0 0.0
    %1622 = vmatprep.subr.mxu0 0.0
    %1623 = vmatpush1.msra.mxu0 0.0
    %1624 = vmatprep.subr.mxu0 0.0
    %1625 = vmatpush1.msra.mxu0 0.0
    %1626 = vmatprep.subr.mxu0 0.0
    %1627 = vmatpush1.msra.mxu0 0.0
    %1628 = vmatprep.subr.mxu0 0.0
    %1629 = vmatpush1.msra.mxu0 0.0
    %1630 = vmatprep.subr.mxu0 0.0
    %1631 = vmatpush1.msra.mxu0 0.0
    %1632 = vmatprep.subr.mxu0 0.0
    %1633 = vmatpush1.msra.mxu0 0.0
    %1634 = vmatprep.subr.mxu0 0.0
    %1635 = vmatpush1.msra.mxu0 0.0
    %1636 = vmatprep.subr.mxu0 0.0
    %1637 = vmatpush1.msra.mxu0 0.0
    %1638 = vmatprep.subr.mxu0 0.0
    %1639 = vmatpush1.msra.mxu0 0.0
    %1640 = vmatprep.subr.mxu0 0.0
    %1641 = vmatpush1.msra.mxu0 0.0
    %1642 = vmatprep.subr.mxu0 0.0
    %1643 = vmatpush1.msra.mxu0 0.0
    %1644 = vmatprep.subr.mxu0 0.0
    %1645 = vmatpush1.msra.mxu0 0.0
    %1646 = vmatprep.subr.mxu0 0.0
    %1647 = vmatpush1.msra.mxu0 0.0
    %1648 = vmatprep.subr.mxu0 0.0
    %1649 = vmatpush1.msra.mxu0 0.0
    %1650 = vmatprep.subr.mxu0 0.0
    %1651 = vmatpush1.msra.mxu0 0.0
    %1652 = vmatprep.subr.mxu0 0.0
    %1653 = vmatpush1.msra.mxu0 0.0
    %1654 = vmatprep.subr.mxu0 0.0
    %1655 = vmatpush1.msra.mxu0 0.0
    %1656 = vmatprep.subr.mxu0 0.0
    %1657 = vmatpush1.msra.mxu0 0.0
    %1658 = vmatprep.subr.mxu0 0.0
    %1659 = vmatpush1.msra.mxu0 0.0
    %1660 = vmatprep.subr.mxu0 0.0
    %1661 = vmatpush1.msra.mxu0 0.0
    %1662 = vmatprep.subr.mxu0 0.0
    %1663 = vmatpush1.msra.mxu0 0.0
    %1664 = vmatprep.subr.mxu0 0.0
    %1665 = vmatpush1.msra.mxu0 0.0
    %1666 = vmatprep.mubr.f32.mxu0 0.0
    %1667 = vmatmul.mubr.f32.gmra.mrb[0].mxu0 %v1600
    %v1668 = vpop.f32.mrb[0].mxu0
    %v1669 = vadd.f32 0.0, %v1668
    %v1670 = vpop.f32.mrb[0].mxu0
    %1671 = vdwg.mxu0
    %1672 = vmatprep.subr.mxu0 0.0
    %1673 = vmatpush1.msra.mxu0 %v154
    %1674 = vmatprep.subr.mxu0 0.0
    %1675 = vmatpush1.msra.mxu0 %v155
    %1676 = vmatprep.subr.mxu0 0.0
    %1677 = vmatpush1.msra.mxu0 %v156
    %1678 = vmatprep.subr.mxu0 0.0
    %1679 = vmatpush1.msra.mxu0 %v157
    %1680 = vmatprep.subr.mxu0 0.0
    %1681 = vmatpush1.msra.mxu0 0.0
    %1682 = vmatprep.subr.mxu0 0.0
    %1683 = vmatpush1.msra.mxu0 0.0
    %1684 = vmatprep.subr.mxu0 0.0
    %1685 = vmatpush1.msra.mxu0 0.0
    %1686 = vmatprep.subr.mxu0 0.0
    %1687 = vmatpush1.msra.mxu0 0.0
    %1688 = vmatprep.subr.mxu0 0.0
    %1689 = vmatpush1.msra.mxu0 0.0
    %1690 = vmatprep.subr.mxu0 0.0
    %1691 = vmatpush1.msra.mxu0 0.0
    %1692 = vmatprep.subr.mxu0 0.0
    %1693 = vmatpush1.msra.mxu0 0.0
    %1694 = vmatprep.subr.mxu0 0.0
    %1695 = vmatpush1.msra.mxu0 0.0
    %1696 = vmatprep.subr.mxu0 0.0
    %1697 = vmatpush1.msra.mxu0 0.0
    %1698 = vmatprep.subr.mxu0 0.0
    %1699 = vmatpush1.msra.mxu0 0.0
    %1700 = vmatprep.subr.mxu0 0.0
    %1701 = vmatpush1.msra.mxu0 0.0
    %1702 = vmatprep.subr.mxu0 0.0
    %1703 = vmatpush1.msra.mxu0 0.0
    %1704 = vmatprep.subr.mxu0 0.0
    %1705 = vmatpush1.msra.mxu0 0.0
    %1706 = vmatprep.subr.mxu0 0.0
    %1707 = vmatpush1.msra.mxu0 0.0
    %1708 = vmatprep.subr.mxu0 0.0
    %1709 = vmatpush1.msra.mxu0 0.0
    %1710 = vmatprep.subr.mxu0 0.0
    %1711 = vmatpush1.msra.mxu0 0.0
    %1712 = vmatprep.subr.mxu0 0.0
    %1713 = vmatpush1.msra.mxu0 0.0
    %1714 = vmatprep.subr.mxu0 0.0
    %1715 = vmatpush1.msra.mxu0 0.0
    %1716 = vmatprep.subr.mxu0 0.0
    %1717 = vmatpush1.msra.mxu0 0.0
    %1718 = vmatprep.subr.mxu0 0.0
    %1719 = vmatpush1.msra.mxu0 0.0
    %1720 = vmatprep.subr.mxu0 0.0
    %1721 = vmatpush1.msra.mxu0 0.0
    %1722 = vmatprep.subr.mxu0 0.0
    %1723 = vmatpush1.msra.mxu0 0.0
    %1724 = vmatprep.subr.mxu0 0.0
    %1725 = vmatpush1.msra.mxu0 0.0
    %1726 = vmatprep.subr.mxu0 0.0
    %1727 = vmatpush1.msra.mxu0 0.0
    %1728 = vmatprep.subr.mxu0 0.0
    %1729 = vmatpush1.msra.mxu0 0.0
    %1730 = vmatprep.subr.mxu0 0.0
    %1731 = vmatpush1.msra.mxu0 0.0
    %1732 = vmatprep.subr.mxu0 0.0
    %1733 = vmatpush1.msra.mxu0 0.0
    %1734 = vmatprep.subr.mxu0 0.0
    %1735 = vmatpush1.msra.mxu0 0.0
    %1736 = vmatprep.mubr.f32.mxu0 0.0
    %1737 = vmatmul.mubr.f32.gmra.mrb[0].mxu0 %v1600
    %v1738 = vpop.f32.mrb[0].mxu0
    %v1739 = vadd.f32 0.0, %v1738
    %v1740 = vpop.f32.mrb[0].mxu0
    %1741 = vdwg.mxu0
    %v1742 = vld [vmem:[#allocation3 + $0xc] sm:$0x3]
    %v1743 = vadd.f32 %v1742, %v1669
    %v1744 = vxor.u32 %v1743, 2147483648
    %v1745 = vmul.f32 %v1744, 1.442695
    %v1746 = vpow.pop %v1745
    %v1747 = vadd.f32 %v1746, 1.0
    %v1748 = vrcp.pop %v1747
    %v1749 = vmul.f32 1.0, %v1748
    %v1750 = vld [vmem:[#allocation4 + $0xc] sm:$0x3]
    %v1751 = vadd.f32 %v1750, %v1739
    %v1752 = vxor.u32 %v1751, 2147483648
    %v1753 = vmul.f32 %v1752, 1.442695
    %v1754 = vpow.pop %v1753
    %v1755 = vadd.f32 %v1754, 1.0
    %v1756 = vrcp.pop %v1755
    %v1757 = vmul.f32 1.0, %v1756
    %v1758 = vld [vmem:[#allocation5 + $0xc] sm:$0x3]
    %1759 = vmatprep.subr.mxu0 0.0
    %1760 = vmatpush1.msra.mxu0 %v158
    %1761 = vmatprep.subr.mxu0 0.0
    %1762 = vmatpush1.msra.mxu0 %v159
    %1763 = vmatprep.subr.mxu0 0.0
    %1764 = vmatpush1.msra.mxu0 %v160
    %1765 = vmatprep.subr.mxu0 0.0
    %1766 = vmatpush1.msra.mxu0 %v161
    %1767 = vmatprep.subr.mxu0 0.0
    %1768 = vmatpush1.msra.mxu0 0.0
    %1769 = vmatprep.subr.mxu0 0.0
    %1770 = vmatpush1.msra.mxu0 0.0
    %1771 = vmatprep.subr.mxu0 0.0
    %1772 = vmatpush1.msra.mxu0 0.0
    %1773 = vmatprep.subr.mxu0 0.0
    %1774 = vmatpush1.msra.mxu0 0.0
    %1775 = vmatprep.subr.mxu0 0.0
    %1776 = vmatpush1.msra.mxu0 0.0
    %1777 = vmatprep.subr.mxu0 0.0
    %1778 = vmatpush1.msra.mxu0 0.0
    %1779 = vmatprep.subr.mxu0 0.0
    %1780 = vmatpush1.msra.mxu0 0.0
    %1781 = vmatprep.subr.mxu0 0.0
    %1782 = vmatpush1.msra.mxu0 0.0
    %1783 = vmatprep.subr.mxu0 0.0
    %1784 = vmatpush1.msra.mxu0 0.0
    %1785 = vmatprep.subr.mxu0 0.0
    %1786 = vmatpush1.msra.mxu0 0.0
    %1787 = vmatprep.subr.mxu0 0.0
    %1788 = vmatpush1.msra.mxu0 0.0
    %1789 = vmatprep.subr.mxu0 0.0
    %1790 = vmatpush1.msra.mxu0 0.0
    %1791 = vmatprep.subr.mxu0 0.0
    %1792 = vmatpush1.msra.mxu0 0.0
    %1793 = vmatprep.subr.mxu0 0.0
    %1794 = vmatpush1.msra.mxu0 0.0
    %1795 = vmatprep.subr.mxu0 0.0
    %1796 = vmatpush1.msra.mxu0 0.0
    %1797 = vmatprep.subr.mxu0 0.0
    %1798 = vmatpush1.msra.mxu0 0.0
    %1799 = vmatprep.subr.mxu0 0.0
    %1800 = vmatpush1.msra.mxu0 0.0
    %1801 = vmatprep.subr.mxu0 0.0
    %1802 = vmatpush1.msra.mxu0 0.0
    %1803 = vmatprep.subr.mxu0 0.0
    %1804 = vmatpush1.msra.mxu0 0.0
    %1805 = vmatprep.subr.mxu0 0.0
    %1806 = vmatpush1.msra.mxu0 0.0
    %1807 = vmatprep.subr.mxu0 0.0
    %1808 = vmatpush1.msra.mxu0 0.0
    %1809 = vmatprep.subr.mxu0 0.0
    %1810 = vmatpush1.msra.mxu0 0.0
    %1811 = vmatprep.subr.mxu0 0.0
    %1812 = vmatpush1.msra.mxu0 0.0
    %1813 = vmatprep.subr.mxu0 0.0
    %1814 = vmatpush1.msra.mxu0 0.0
    %1815 = vmatprep.subr.mxu0 0.0
    %1816 = vmatpush1.msra.mxu0 0.0
    %1817 = vmatprep.subr.mxu0 0.0
    %1818 = vmatpush1.msra.mxu0 0.0
    %1819 = vmatprep.subr.mxu0 0.0
    %1820 = vmatpush1.msra.mxu0 0.0
    %1821 = vmatprep.subr.mxu0 0.0
    %1822 = vmatpush1.msra.mxu0 0.0
    %1823 = vmatprep.mubr.f32.mxu0 0.0
    %1824 = vmatmul.mubr.f32.gmra.mrb[0].mxu0 %v1600
    %v1825 = vpop.f32.mrb[0].mxu0
    %v1826 = vadd.f32 %v328, %v1825
    %v1827 = vpop.f32.mrb[0].mxu0
    %1828 = vdwg.mxu0
    %v1829 = vmul.f32 %v1749, %v1826
    %v1830 = vadd.f32 %v1758, %v1829
    %v1831 = vtanh.pop %v1830
    %v1832 = vsub.f32 1.0, %v1757
    %v1833 = vmul.f32 %v1832, %v1831
    %v1834 = vmul.f32 %v1757, %v1597
    %v1835 = vadd.f32 %v1833, %v1834
    %1836 = vst.msk [vmem:[#allocation8 + $0xc] sm:$0x3] %vm407, %v1835
    %v1838 = vsel %vm129, %v1835, 0
    %1840 = vmatprep.subr.mxu0 0.0
    %1841 = vmatpush1.msra.mxu0 %v150
    %1842 = vmatprep.subr.mxu0 0.0
    %1843 = vmatpush1.msra.mxu0 %v151
    %1844 = vmatprep.subr.mxu0 0.0
    %1845 = vmatpush1.msra.mxu0 %v152
    %1846 = vmatprep.subr.mxu0 0.0
    %1847 = vmatpush1.msra.mxu0 %v153
    %1848 = vmatprep.subr.mxu0 0.0
    %1849 = vmatpush1.msra.mxu0 0.0
    %1850 = vmatprep.subr.mxu0 0.0
    %1851 = vmatpush1.msra.mxu0 0.0
    %1852 = vmatprep.subr.mxu0 0.0
    %1853 = vmatpush1.msra.mxu0 0.0
    %1854 = vmatprep.subr.mxu0 0.0
    %1855 = vmatpush1.msra.mxu0 0.0
    %1856 = vmatprep.subr.mxu0 0.0
    %1857 = vmatpush1.msra.mxu0 0.0
    %1858 = vmatprep.subr.mxu0 0.0
    %1859 = vmatpush1.msra.mxu0 0.0
    %1860 = vmatprep.subr.mxu0 0.0
    %1861 = vmatpush1.msra.mxu0 0.0
    %1862 = vmatprep.subr.mxu0 0.0
    %1863 = vmatpush1.msra.mxu0 0.0
    %1864 = vmatprep.subr.mxu0 0.0
    %1865 = vmatpush1.msra.mxu0 0.0
    %1866 = vmatprep.subr.mxu0 0.0
    %1867 = vmatpush1.msra.mxu0 0.0
    %1868 = vmatprep.subr.mxu0 0.0
    %1869 = vmatpush1.msra.mxu0 0.0
    %1870 = vmatprep.subr.mxu0 0.0
    %1871 = vmatpush1.msra.mxu0 0.0
    %1872 = vmatprep.subr.mxu0 0.0
    %1873 = vmatpush1.msra.mxu0 0.0
    %1874 = vmatprep.subr.mxu0 0.0
    %1875 = vmatpush1.msra.mxu0 0.0
    %1876 = vmatprep.subr.mxu0 0.0
    %1877 = vmatpush1.msra.mxu0 0.0
    %1878 = vmatprep.subr.mxu0 0.0
    %1879 = vmatpush1.msra.mxu0 0.0
    %1880 = vmatprep.subr.mxu0 0.0
    %1881 = vmatpush1.msra.mxu0 0.0
    %1882 = vmatprep.subr.mxu0 0.0
    %1883 = vmatpush1.msra.mxu0 0.0
    %1884 = vmatprep.subr.mxu0 0.0
    %1885 = vmatpush1.msra.mxu0 0.0
    %1886 = vmatprep.subr.mxu0 0.0
    %1887 = vmatpush1.msra.mxu0 0.0
    %1888 = vmatprep.subr.mxu0 0.0
    %1889 = vmatpush1.msra.mxu0 0.0
    %1890 = vmatprep.subr.mxu0 0.0
    %1891 = vmatpush1.msra.mxu0 0.0
    %1892 = vmatprep.subr.mxu0 0.0
    %1893 = vmatpush1.msra.mxu0 0.0
    %1894 = vmatprep.subr.mxu0 0.0
    %1895 = vmatpush1.msra.mxu0 0.0
    %1896 = vmatprep.subr.mxu0 0.0
    %1897 = vmatpush1.msra.mxu0 0.0
    %1898 = vmatprep.subr.mxu0 0.0
    %1899 = vmatpush1.msra.mxu0 0.0
    %1900 = vmatprep.subr.mxu0 0.0
    %1901 = vmatpush1.msra.mxu0 0.0
    %1902 = vmatprep.subr.mxu0 0.0
    %1903 = vmatpush1.msra.mxu0 0.0
    %1904 = vmatprep.mubr.f32.mxu0 0.0
    %1905 = vmatmul.mubr.f32.gmra.mrb[0].mxu0 %v1838
    %v1906 = vpop.f32.mrb[0].mxu0
    %v1907 = vadd.f32 0.0, %v1906
    %v1908 = vpop.f32.mrb[0].mxu0
    %1909 = vdwg.mxu0
    %1910 = vmatprep.subr.mxu0 0.0
    %1911 = vmatpush1.msra.mxu0 %v154
    %1912 = vmatprep.subr.mxu0 0.0
    %1913 = vmatpush1.msra.mxu0 %v155
    %1914 = vmatprep.subr.mxu0 0.0
    %1915 = vmatpush1.msra.mxu0 %v156
    %1916 = vmatprep.subr.mxu0 0.0
    %1917 = vmatpush1.msra.mxu0 %v157
    %1918 = vmatprep.subr.mxu0 0.0
    %1919 = vmatpush1.msra.mxu0 0.0
    %1920 = vmatprep.subr.mxu0 0.0
    %1921 = vmatpush1.msra.mxu0 0.0
    %1922 = vmatprep.subr.mxu0 0.0
    %1923 = vmatpush1.msra.mxu0 0.0
    %1924 = vmatprep.subr.mxu0 0.0
    %1925 = vmatpush1.msra.mxu0 0.0
    %1926 = vmatprep.subr.mxu0 0.0
    %1927 = vmatpush1.msra.mxu0 0.0
    %1928 = vmatprep.subr.mxu0 0.0
    %1929 = vmatpush1.msra.mxu0 0.0
    %1930 = vmatprep.subr.mxu0 0.0
    %1931 = vmatpush1.msra.mxu0 0.0
    %1932 = vmatprep.subr.mxu0 0.0
    %1933 = vmatpush1.msra.mxu0 0.0
    %1934 = vmatprep.subr.mxu0 0.0
    %1935 = vmatpush1.msra.mxu0 0.0
    %1936 = vmatprep.subr.mxu0 0.0
    %1937 = vmatpush1.msra.mxu0 0.0
    %1938 = vmatprep.subr.mxu0 0.0
    %1939 = vmatpush1.msra.mxu0 0.0
    %1940 = vmatprep.subr.mxu0 0.0
    %1941 = vmatpush1.msra.mxu0 0.0
    %1942 = vmatprep.subr.mxu0 0.0
    %1943 = vmatpush1.msra.mxu0 0.0
    %1944 = vmatprep.subr.mxu0 0.0
    %1945 = vmatpush1.msra.mxu0 0.0
    %1946 = vmatprep.subr.mxu0 0.0
    %1947 = vmatpush1.msra.mxu0 0.0
    %1948 = vmatprep.subr.mxu0 0.0
    %1949 = vmatpush1.msra.mxu0 0.0
    %1950 = vmatprep.subr.mxu0 0.0
    %1951 = vmatpush1.msra.mxu0 0.0
    %1952 = vmatprep.subr.mxu0 0.0
    %1953 = vmatpush1.msra.mxu0 0.0
    %1954 = vmatprep.subr.mxu0 0.0
    %1955 = vmatpush1.msra.mxu0 0.0
    %1956 = vmatprep.subr.mxu0 0.0
    %1957 = vmatpush1.msra.mxu0 0.0
    %1958 = vmatprep.subr.mxu0 0.0
    %1959 = vmatpush1.msra.mxu0 0.0
    %1960 = vmatprep.subr.mxu0 0.0
    %1961 = vmatpush1.msra.mxu0 0.0
    %1962 = vmatprep.subr.mxu0 0.0
    %1963 = vmatpush1.msra.mxu0 0.0
    %1964 = vmatprep.subr.mxu0 0.0
    %1965 = vmatpush1.msra.mxu0 0.0
    %1966 = vmatprep.subr.mxu0 0.0
    %1967 = vmatpush1.msra.mxu0 0.0
    %1968 = vmatprep.subr.mxu0 0.0
    %1969 = vmatpush1.msra.mxu0 0.0
    %1970 = vmatprep.subr.mxu0 0.0
    %1971 = vmatpush1.msra.mxu0 0.0
    %1972 = vmatprep.subr.mxu0 0.0
    %1973 = vmatpush1.msra.mxu0 0.0
    %1974 = vmatprep.mubr.f32.mxu0 0.0
    %1975 = vmatmul.mubr.f32.gmra.mrb[0].mxu0 %v1838
    %v1976 = vpop.f32.mrb[0].mxu0
    %v1977 = vadd.f32 0.0, %v1976
    %v1978 = vpop.f32.mrb[0].mxu0
    %1979 = vdwg.mxu0
    %v1980 = vld [vmem:[#allocation3 + $0xe] sm:$0x3]
    %v1981 = vadd.f32 %v1980, %v1907
    %v1982 = vxor.u32 %v1981, 2147483648
    %v1983 = vmul.f32 %v1982, 1.442695
    %v1984 = vpow.pop %v1983
    %v1985 = vadd.f32 %v1984, 1.0
    %v1986 = vrcp.pop %v1985
    %v1987 = vmul.f32 1.0, %v1986
    %v1988 = vld [vmem:[#allocation4 + $0xe] sm:$0x3]
    %v1989 = vadd.f32 %v1988, %v1977
    %v1990 = vxor.u32 %v1989, 2147483648
    %v1991 = vmul.f32 %v1990, 1.442695
    %v1992 = vpow.pop %v1991
    %v1993 = vadd.f32 %v1992, 1.0
    %v1994 = vrcp.pop %v1993
    %v1995 = vmul.f32 1.0, %v1994
    %v1996 = vld [vmem:[#allocation5 + $0xe] sm:$0x3]
    %1997 = vmatprep.subr.mxu0 0.0
    %1998 = vmatpush1.msra.mxu0 %v158
    %1999 = vmatprep.subr.mxu0 0.0
    %2000 = vmatpush1.msra.mxu0 %v159
    %2001 = vmatprep.subr.mxu0 0.0
    %2002 = vmatpush1.msra.mxu0 %v160
    %2003 = vmatprep.subr.mxu0 0.0
    %2004 = vmatpush1.msra.mxu0 %v161
    %2005 = vmatprep.subr.mxu0 0.0
    %2006 = vmatpush1.msra.mxu0 0.0
    %2007 = vmatprep.subr.mxu0 0.0
    %2008 = vmatpush1.msra.mxu0 0.0
    %2009 = vmatprep.subr.mxu0 0.0
    %2010 = vmatpush1.msra.mxu0 0.0
    %2011 = vmatprep.subr.mxu0 0.0
    %2012 = vmatpush1.msra.mxu0 0.0
    %2013 = vmatprep.subr.mxu0 0.0
    %2014 = vmatpush1.msra.mxu0 0.0
    %2015 = vmatprep.subr.mxu0 0.0
    %2016 = vmatpush1.msra.mxu0 0.0
    %2017 = vmatprep.subr.mxu0 0.0
    %2018 = vmatpush1.msra.mxu0 0.0
    %2019 = vmatprep.subr.mxu0 0.0
    %2020 = vmatpush1.msra.mxu0 0.0
    %2021 = vmatprep.subr.mxu0 0.0
    %2022 = vmatpush1.msra.mxu0 0.0
    %2023 = vmatprep.subr.mxu0 0.0
    %2024 = vmatpush1.msra.mxu0 0.0
    %2025 = vmatprep.subr.mxu0 0.0
    %2026 = vmatpush1.msra.mxu0 0.0
    %2027 = vmatprep.subr.mxu0 0.0
    %2028 = vmatpush1.msra.mxu0 0.0
    %2029 = vmatprep.subr.mxu0 0.0
    %2030 = vmatpush1.msra.mxu0 0.0
    %2031 = vmatprep.subr.mxu0 0.0
    %2032 = vmatpush1.msra.mxu0 0.0
    %2033 = vmatprep.subr.mxu0 0.0
    %2034 = vmatpush1.msra.mxu0 0.0
    %2035 = vmatprep.subr.mxu0 0.0
    %2036 = vmatpush1.msra.mxu0 0.0
    %2037 = vmatprep.subr.mxu0 0.0
    %2038 = vmatpush1.msra.mxu0 0.0
    %2039 = vmatprep.subr.mxu0 0.0
    %2040 = vmatpush1.msra.mxu0 0.0
    %2041 = vmatprep.subr.mxu0 0.0
    %2042 = vmatpush1.msra.mxu0 0.0
    %2043 = vmatprep.subr.mxu0 0.0
    %2044 = vmatpush1.msra.mxu0 0.0
    %2045 = vmatprep.subr.mxu0 0.0
    %2046 = vmatpush1.msra.mxu0 0.0
    %2047 = vmatprep.subr.mxu0 0.0
    %2048 = vmatpush1.msra.mxu0 0.0
    %2049 = vmatprep.subr.mxu0 0.0
    %2050 = vmatpush1.msra.mxu0 0.0
    %2051 = vmatprep.subr.mxu0 0.0
    %2052 = vmatpush1.msra.mxu0 0.0
    %2053 = vmatprep.subr.mxu0 0.0
    %2054 = vmatpush1.msra.mxu0 0.0
    %2055 = vmatprep.subr.mxu0 0.0
    %2056 = vmatpush1.msra.mxu0 0.0
    %2057 = vmatprep.subr.mxu0 0.0
    %2058 = vmatpush1.msra.mxu0 0.0
    %2059 = vmatprep.subr.mxu0 0.0
    %2060 = vmatpush1.msra.mxu0 0.0
    %2061 = vmatprep.mubr.f32.mxu0 0.0
    %2062 = vmatmul.mubr.f32.gmra.mrb[0].mxu0 %v1838
    %v2063 = vpop.f32.mrb[0].mxu0
    %v2064 = vadd.f32 %v328, %v2063
    %v2065 = vpop.f32.mrb[0].mxu0
    %2066 = vdwg.mxu0
    %v2067 = vmul.f32 %v1987, %v2064
    %v2068 = vadd.f32 %v1996, %v2067
    %v2069 = vtanh.pop %v2068
    %v2070 = vsub.f32 1.0, %v1995
    %v2071 = vmul.f32 %v2070, %v2069
    %v2072 = vmul.f32 %v1995, %v1835
    %v2073 = vadd.f32 %v2071, %v2072
    %2074 = vst.msk [vmem:[#allocation8 + $0xe] sm:$0x3] %vm407, %v2073
    %2075 = vst.msk [vmem:[#allocation2] sm:$0x3] %vm407, %v2073
    %v2076 = vld [vmem:[#allocation8] sm:$0xff]
    %v2077 = vld [vmem:[#allocation8 + $0x8] sm:$0xff]
    %v2078 = vpack.c.bf16 %v2077, %v2076
    %v2079 = vld [vmem:[%s7] sm:$0xf]
    %v2080 = vld [vmem:[%s7 + $0x4] sm:$0xf]
    %v2081 = vld [vmem:[%s7 + $0x8] sm:$0xf]
    %v2082 = vld [vmem:[%s7 + $0xc] sm:$0xf]
    %v2083 = vld [vmem:[%s8] sm:$0x1]
    %v2085 = vlaneseq
    %v2086 = vshrl.u32 %v2085, 7
    %v2087 = vsub.s32 0, %v2086
    %v2088 = vrot.slane %v2083, %v2087
    %v2094 = vunpack.c.l.b16 %v2079
    %v2095 = vunpack.c.l.b16 %v2080
    %v2096 = vunpack.c.l.b16 %v2081
    %v2097 = vunpack.c.l.b16 %v2082
    %v2098 = vpack.c.b16 %v2095, %v2094
    %v2099 = vpack.c.b16 %v2097, %v2096
    %v2103 = vsel %vm129, %v2078, 0
    %2105 = vmatprep.subr.bf16.mxu0 0
    %2106 = vmatpush1.bf16.msra.mxu0 %v2098
    %2107 = vmatprep.subr.bf16.mxu0 0
    %2108 = vmatpush1.bf16.msra.mxu0 %v2099
    %2109 = vmatprep.subr.bf16.mxu0 0
    %2110 = vmatpush1.bf16.msra.mxu0 0
    %2111 = vmatprep.subr.bf16.mxu0 0
    %2112 = vmatpush1.bf16.msra.mxu0 0
    %2113 = vmatprep.subr.bf16.mxu0 0
    %2114 = vmatpush1.bf16.msra.mxu0 0
    %2115 = vmatprep.subr.bf16.mxu0 0
    %2116 = vmatpush1.bf16.msra.mxu0 0
    %2117 = vmatprep.subr.bf16.mxu0 0
    %2118 = vmatpush1.bf16.msra.mxu0 0
    %2119 = vmatprep.subr.bf16.mxu0 0
    %2120 = vmatpush1.bf16.msra.mxu0 0
    %2121 = vmatprep.subr.bf16.mxu0 0
    %2122 = vmatpush1.bf16.msra.mxu0 0
    %2123 = vmatprep.subr.bf16.mxu0 0
    %2124 = vmatpush1.bf16.msra.mxu0 0
    %2125 = vmatprep.subr.bf16.mxu0 0
    %2126 = vmatpush1.bf16.msra.mxu0 0
    %2127 = vmatprep.subr.bf16.mxu0 0
    %2128 = vmatpush1.bf16.msra.mxu0 0
    %2129 = vmatprep.subr.bf16.mxu0 0
    %2130 = vmatpush1.bf16.msra.mxu0 0
    %2131 = vmatprep.subr.bf16.mxu0 0
    %2132 = vmatpush1.bf16.msra.mxu0 0
    %2133 = vmatprep.subr.bf16.mxu0 0
    %2134 = vmatpush1.bf16.msra.mxu0 0
    %2135 = vmatprep.subr.bf16.mxu0 0
    %2136 = vmatpush1.bf16.msra.mxu0 0
    %2137 = vmatprep.mubr.bf16.mxu0 0
    %2138 = vmatmul.mubr.bf16.gmra.mrb[0].mxu0 %v2103
    %v2139 = vpop.f32.mrb[0].mxu0
    %v2140 = vadd.f32 %v2088, %v2139
    %v2141 = vpop.f32.mrb[0].mxu0
    %v2142 = vpop.f32.mrb[0].mxu0
    %v2143 = vadd.f32 %v2088, %v2142
    %v2144 = vpop.f32.mrb[0].mxu0
    %2145 = vdwg.mxu0
    %vm2146 = vcmask 64512
    %2147 = vst.msk [vmem:[#allocation6] sm:$0xff] %vm2146, %v2140
    %2148 = vst.msk [vmem:[#allocation6 + $0x8] sm:$0xff] %vm2146, %v2143
    // Predicated region
    $region42: #{gating_encoder_forward.1} parent=1 // pred_check
      _
    $region43: #{gating_encoder_forward.1} parent=1 // pred_check_branch
      %2150 = sbr.rel (0) target = $region45
    $region44: #{gating_encoder_forward.1} parent=1 // pred_region
      %s2152 = ssub.s32 256, 256
      %2153 = vsyncadd [#allocation7], %s2152
      %s2154 = sshll.u32 [#allocation6], 4
      %s2155 = int_to_ptr.vmem [resolvable:$true] %s2154
      %2160 = dma.vmem_to_hbm [thread:$0]  %s2155, 256, %s9, [#allocation7], 128, 128, 8
    $region45: #{gating_encoder_forward.1} parent=1 // pred_fallthru
      _
    // Predicated region
    $region46: #{gating_encoder_forward.1} parent=1 // pred_check
      _
    $region47: #{gating_encoder_forward.1} parent=1 // pred_check_branch
      %2162 = sbr.rel (0) target = $region49
    $region48: #{gating_encoder_forward.1} parent=1 // pred_region
      %s2164 = ssub.s32 256, 256
      %2165 = vsyncadd [#allocation9], %s2164
      %s2166 = sshll.u32 [#allocation8], 4
      %s2167 = int_to_ptr.vmem [resolvable:$true] %s2166
      %2172 = dma.vmem_to_hbm [thread:$0]  %s2167, 256, %s10, [#allocation9], 128, 128, 8
    $region49: #{gating_encoder_forward.1} parent=1 // pred_fallthru
      _
    // Predicated region
    $region50: #{gating_encoder_forward.1} parent=1 // pred_check
      _
    $region51: #{gating_encoder_forward.1} parent=1 // pred_check_branch
      %2174 = sbr.rel (0) target = $region53
    $region52: #{gating_encoder_forward.1} parent=1 // pred_region
      %2175 = dma.done [#allocation7], 256
    $region53: #{gating_encoder_forward.1} parent=1 // pred_fallthru
      _
    // Predicated region
    $region54: #{gating_encoder_forward.1} parent=1 // pred_check
      _
    $region55: #{gating_encoder_forward.1} parent=1 // pred_check_branch
      %2177 = sbr.rel (0) target = $region57
    $region56: #{gating_encoder_forward.1} parent=1 // pred_region
      %2178 = dma.done [#allocation9], 256
    $region57: #{gating_encoder_forward.1} parent=1 // pred_fallthru
      _
    %2179 = vsyncpa [#allocation7], 1
    %2180 = vsyncpa [#allocation9], 1

</llo_original>
